<compile_context>
chip_gen: v7x
topology: tpu7x:2x2x1
jax: 0.10.0
libtpu: 0.0.40
codegen_flags: <defaults>
</compile_context>

<pallas_src>
import math
import functools

import jax
import jax.numpy as jnp
from jax.experimental import pallas as pl
from jax.experimental.pallas import tpu as pltpu

# ---- config (small synthetic shapes, consistent with the module) ----------
BATCH = 2
SEQ = 8
HIDDEN = 32
NUM_HEADS = 4
HEAD_DIM = HIDDEN // NUM_HEADS  # attention_head_size


def attention_kernel(x_ref, wqkv_ref, bqkv_ref, wo_ref, bo_ref, out_ref, *rest,
                     batch, seq, hidden, num_heads, head_dim, vis):
    """Single invocation processes the whole (B*S, H) problem.

    x_ref:     (B*S, H)        VMEM
    wqkv_ref:  (H, 3H)         VMEM (Wq|Wk|Wv pre-concatenated, pre-transposed)
    bqkv_ref:  (1, 3H)         VMEM
    wo_ref:    (H, H)          VMEM
    bo_ref:    (1, H)          VMEM
    out_ref:   (B*S, H)        VMEM (output)
    probs_ref: (B, NH, S, S)   VMEM (output, only when vis=True; debug path)
    """
    probs_ref = rest[0] if vis else None

    x = x_ref[...].astype(jnp.float32)                          # (B*S, H)

    # Fused QKV projection: one MXU matmul + one bias add.
    qkv = jnp.dot(x, wqkv_ref[...],
                  preferred_element_type=jnp.float32) + bqkv_ref[...]

    scale = 1.0 / math.sqrt(head_dim)
    q = qkv[:, 0 * hidden:1 * hidden] * scale                   # scale folded in once
    k = qkv[:, 1 * hidden:2 * hidden]
    v = qkv[:, 2 * hidden:3 * hidden]

    n = batch * seq
    # Register-resident accumulator for the output projection (no VMEM scratch).
    acc = jnp.zeros((n, hidden), dtype=jnp.float32)

    # Per-head loop, batched over B (NH tiny iterations, fully unrolled).
    for h in range(num_heads):
        c0 = h * head_dim
        # Lane slice once per tensor per head; the reshape is a free
        # leading-dim split (S == sublane tile).
        qh = q[:, c0:c0 + head_dim].reshape(batch, seq, head_dim)   # (B, S, D)
        kh = k[:, c0:c0 + head_dim].reshape(batch, seq, head_dim)
        vh = v[:, c0:c0 + head_dim].reshape(batch, seq, head_dim)

        # Scores (B, S, S): batched contraction over D, no materialized k^T.
        s = jnp.einsum('bqd,bkd->bqk', qh, kh,
                       preferred_element_type=jnp.float32)

        # Softmax over the key axis; reciprocal on the EUP + one NR refinement.
        m = jnp.max(s, axis=-1, keepdims=True)
        e = jnp.exp(s - m)
        denom = jnp.sum(e, axis=-1, keepdims=True)
        inv = pl.reciprocal(denom, approx=True)
        inv = inv * (2.0 - denom * inv)                          # Newton-Raphson
        p = e * inv                                              # (B, S, S)

        if vis:
            # Debug-only writeback (production path vis=False skips it).
            probs_ref[:, h, :, :] = p.astype(probs_ref.dtype)

        # TODO(synk): attn_dropout / proj_dropout are identity in eval mode;
        # training-mode dropout (pltpu.prng_*) not implemented.

        # Context for this head, then fold the output projection for this
        # head's columns directly into the accumulator (no ctx scratch).
        ctx_h = jnp.einsum('bqk,bkd->bqd', p, vh,
                           preferred_element_type=jnp.float32)   # (B, S, D)
        acc = acc + jnp.dot(ctx_h.reshape(n, head_dim),
                            wo_ref[c0:c0 + head_dim, :],
                            preferred_element_type=jnp.float32)

    out_ref[...] = (acc + bo_ref[...]).astype(out_ref.dtype)


def prepare_params(wq, bq, wk, bk, wv, bv, wo, bo):
    """Fuse Q/K/V weights & biases ONCE at parameter-load time (hoisted out of
    the per-call forward path)."""
    w_qkv = jnp.concatenate([wq, wk, wv], axis=1)                # (H, 3H)
    b_qkv = jnp.concatenate([bq, bk, bv], axis=1)                # (1, 3H)
    return w_qkv, b_qkv, wo, bo


@functools.partial(jax.jit, static_argnames=("vis",))
def attention_forward(x, w_qkv, b_qkv, wo, bo, vis=True):
    """x: (B, S, H); w_qkv (H, 3H), b_qkv (1, 3H), wo (H, H), bo (1, H)."""
    B, S, H = x.shape
    num_heads = NUM_HEADS
    head_dim = H // num_heads

    x2 = x.reshape(B * S, H)

    kernel = functools.partial(
        attention_kernel, batch=B, seq=S, hidden=H,
        num_heads=num_heads, head_dim=head_dim, vis=vis)

    out_shape = [jax.ShapeDtypeStruct((B * S, H), x.dtype)]
    if vis:
        out_shape.append(
            jax.ShapeDtypeStruct((B, num_heads, S, S), jnp.float32))

    results = pl.pallas_call(
        kernel,
        out_shape=tuple(out_shape),
    )(x2, w_qkv, b_qkv, wo, bo)

    out = results[0].reshape(B, S, H)
    probs = results[1] if vis else None
    return out, probs


def reference_forward(x, wq, bq, wk, bk, wv, bv, wo, bo):
    """Pure-JAX reference mirroring the PyTorch module (eval mode)."""
    B, S, H = x.shape
    q = x @ wq + bq
    k = x @ wk + bk
    v = x @ wv + bv

    def split_heads(t):
        return t.reshape(B, S, NUM_HEADS, HEAD_DIM).transpose(0, 2, 1, 3)

    q, k, v = split_heads(q), split_heads(k), split_heads(v)
    scores = jnp.einsum('bhqd,bhkd->bhqk', q, k) / math.sqrt(HEAD_DIM)
    probs = jax.nn.softmax(scores, axis=-1)
    ctx = jnp.einsum('bhqk,bhkd->bhqd', probs, v)
    ctx = ctx.transpose(0, 2, 1, 3).reshape(B, S, H)
    out = ctx @ wo + bo
    return out, probs


if __name__ == "__main__":
    key = jax.random.PRNGKey(0)
    keys = jax.random.split(key, 9)

    x = jax.random.normal(keys[0], (BATCH, SEQ, HIDDEN), dtype=jnp.float32)

    init = lambda k: jax.random.normal(k, (HIDDEN, HIDDEN), jnp.float32) * 0.05
    wq = init(keys[1]); wk = init(keys[2]); wv = init(keys[3]); wo = init(keys[4])
    bq = jax.random.normal(keys[5], (1, HIDDEN), jnp.float32) * 0.01
    bk = jax.random.normal(keys[6], (1, HIDDEN), jnp.float32) * 0.01
    bv = jax.random.normal(keys[7], (1, HIDDEN), jnp.float32) * 0.01
    bo = jax.random.normal(keys[8], (1, HIDDEN), jnp.float32) * 0.01

    # Parameter prep done ONCE (not per forward call).
    w_qkv, b_qkv, wo_p, bo_p = prepare_params(wq, bq, wk, bk, wv, bv, wo, bo)

    # vis=True path (returns attention probs, like the module with vis=True)
    out, probs = attention_forward(x, w_qkv, b_qkv, wo_p, bo_p, vis=True)
    out = jax.block_until_ready(out)
    probs = jax.block_until_ready(probs)

    ref_out, ref_probs = reference_forward(
        x, wq, bq[0], wk, bk[0], wv, bv[0], wo, bo[0])
    assert jnp.allclose(out, ref_out, atol=1e-4, rtol=1e-4), "output mismatch"
    assert jnp.allclose(probs, ref_probs, atol=1e-4, rtol=1e-4), "probs mismatch"

    # vis=False path (production path: no probs writeback at all)
    out2, probs2 = attention_forward(x, w_qkv, b_qkv, wo_p, bo_p, vis=False)
    out2 = jax.block_until_ready(out2)
    assert probs2 is None
    assert jnp.allclose(out2, ref_out, atol=1e-4, rtol=1e-4), "output mismatch (vis=False)"

    print("KERNEL_OK")
</pallas_src>

<mosaic_0001>
module attributes {stable_mosaic.version = 11 : i64} {
  func.func @attention_kernel(%arg0: memref<16x32xf32, #tpu.memory_space<vmem>>, %arg1: memref<32x96xf32, #tpu.memory_space<vmem>>, %arg2: memref<1x96xf32, #tpu.memory_space<vmem>>, %arg3: memref<32x32xf32, #tpu.memory_space<vmem>>, %arg4: memref<1x32xf32, #tpu.memory_space<vmem>>, %arg5: memref<16x32xf32, #tpu.memory_space<vmem>>, %arg6: memref<2x4x8x8xf32, #tpu.memory_space<vmem>>) attributes {dimension_semantics = [], scalar_prefetch = 0 : i64, scratch_operands = 0 : i64, tpu.core_type = #tpu.core_type<tc>} {
    %c0 = arith.constant 0 : index
    %c0_0 = arith.constant 0 : index
    %0 = vector.load %arg0[%c0, %c0_0] : memref<16x32xf32, #tpu.memory_space<vmem>>, vector<16x32xf32>
    %c0_1 = arith.constant 0 : index
    %c0_2 = arith.constant 0 : index
    %1 = vector.load %arg1[%c0_1, %c0_2] : memref<32x96xf32, #tpu.memory_space<vmem>>, vector<32x96xf32>
    %cst = arith.constant dense<0.000000e+00> : vector<16x96xf32>
    %2 = tpu.matmul %0, %1, %cst {dimension_numbers = #tpu.dot_dimension_numbers<[1], [0], [0], [1], [0, 0, 1, 1], [], []>} : vector<16x32xf32>, vector<32x96xf32>, vector<16x96xf32> -> vector<16x96xf32>
    %c0_3 = arith.constant 0 : index
    %c0_4 = arith.constant 0 : index
    %3 = vector.load %arg2[%c0_3, %c0_4] : memref<1x96xf32, #tpu.memory_space<vmem>>, vector<1x96xf32>
    %4 = vector.broadcast %3 : vector<1x96xf32> to vector<16x96xf32>
    %5 = arith.addf %2, %4 : vector<16x96xf32>
    %6 = vector.extract_strided_slice %5 {offsets = [0, 0], sizes = [16, 32], strides = [1, 1]} : vector<16x96xf32> to vector<16x32xf32>
    %cst_5 = arith.constant 0.353553385 : f32
    %7 = vector.broadcast %cst_5 : f32 to vector<16x32xf32>
    %8 = arith.mulf %6, %7 : vector<16x32xf32>
    %9 = vector.extract_strided_slice %5 {offsets = [0, 32], sizes = [16, 32], strides = [1, 1]} : vector<16x96xf32> to vector<16x32xf32>
    %10 = vector.extract_strided_slice %5 {offsets = [0, 64], sizes = [16, 32], strides = [1, 1]} : vector<16x96xf32> to vector<16x32xf32>
    %cst_6 = arith.constant 0.000000e+00 : f32
    %11 = vector.broadcast %cst_6 : f32 to vector<16x32xf32>
    %12 = vector.extract_strided_slice %8 {offsets = [0, 0], sizes = [16, 8], strides = [1, 1]} : vector<16x32xf32> to vector<16x8xf32>
    %13 = vector.shape_cast %12 : vector<16x8xf32> to vector<2x8x8xf32>
    %14 = vector.extract_strided_slice %9 {offsets = [0, 0], sizes = [16, 8], strides = [1, 1]} : vector<16x32xf32> to vector<16x8xf32>
    %15 = vector.shape_cast %14 : vector<16x8xf32> to vector<2x8x8xf32>
    %16 = vector.extract_strided_slice %10 {offsets = [0, 0], sizes = [16, 8], strides = [1, 1]} : vector<16x32xf32> to vector<16x8xf32>
    %17 = vector.shape_cast %16 : vector<16x8xf32> to vector<2x8x8xf32>
    "tpu.trace_start"() <{level = 10 : i32, message = "bqd,bkd->bqk"}> : () -> ()
    %cst_7 = arith.constant dense<0.000000e+00> : vector<2x8x8xf32>
    %18 = tpu.matmul %13, %15, %cst_7 {dimension_numbers = #tpu.dot_dimension_numbers<[2], [2], [1], [1], [0, 0, 0, 1, 1, 1], [0], [0]>} : vector<2x8x8xf32>, vector<2x8x8xf32>, vector<2x8x8xf32> -> vector<2x8x8xf32>
    "tpu.trace_stop"() : () -> ()
    %cst_8 = arith.constant dense<0xFF800000> : vector<2x8xf32>
    %19 = vector.multi_reduction <maximumf>, %18, %cst_8 [2] : vector<2x8x8xf32> to vector<2x8xf32>
    %20 = vector.shape_cast %19 : vector<2x8xf32> to vector<2x8x1xf32>
    %21 = vector.broadcast %20 : vector<2x8x1xf32> to vector<2x8x8xf32>
    %22 = arith.subf %18, %21 : vector<2x8x8xf32>
    %23 = math.exp %22 : vector<2x8x8xf32>
    %cst_9 = arith.constant dense<0.000000e+00> : vector<2x8xf32>
    %24 = vector.multi_reduction <add>, %23, %cst_9 [2] : vector<2x8x8xf32> to vector<2x8xf32>
    %25 = vector.shape_cast %24 : vector<2x8xf32> to vector<2x8x1xf32>
    %26 = tpu.reciprocal %25 {approx = true} : vector<2x8x1xf32> -> vector<2x8x1xf32>
    %27 = arith.mulf %25, %26 : vector<2x8x1xf32>
    %cst_10 = arith.constant 2.000000e+00 : f32
    %28 = vector.broadcast %cst_10 : f32 to vector<2x8x1xf32>
    %29 = arith.subf %28, %27 : vector<2x8x1xf32>
    %30 = arith.mulf %26, %29 : vector<2x8x1xf32>
    %31 = vector.broadcast %30 : vector<2x8x1xf32> to vector<2x8x8xf32>
    %32 = arith.mulf %23, %31 : vector<2x8x8xf32>
    %c0_11 = arith.constant 0 : index
    %c0_12 = arith.constant 0 : index
    %c0_13 = arith.constant 0 : index
    %c0_14 = arith.constant 0 : index
    %33 = vector.load %arg6[%c0_11, %c0_12, %c0_13, %c0_14] : memref<2x4x8x8xf32, #tpu.memory_space<vmem>>, vector<2x1x8x8xf32>
    %34 = vector.shape_cast %33 : vector<2x1x8x8xf32> to vector<2x8x8xf32>
    %35 = vector.shape_cast %32 : vector<2x8x8xf32> to vector<2x1x8x8xf32>
    tpu.vector_store %arg6[%c0_11, %c0_12, %c0_13, %c0_14], %35 {strides = array<i32>} : memref<2x4x8x8xf32, #tpu.memory_space<vmem>>, vector<2x1x8x8xf32>,
    "tpu.trace_start"() <{level = 10 : i32, message = "bqk,bkd->bqd"}> : () -> ()
    %cst_15 = arith.constant dense<0.000000e+00> : vector<2x8x8xf32>
    %36 = tpu.matmul %32, %17, %cst_15 {dimension_numbers = #tpu.dot_dimension_numbers<[2], [1], [1], [2], [0, 0, 0, 1, 1, 2], [0], [0]>} : vector<2x8x8xf32>, vector<2x8x8xf32>, vector<2x8x8xf32> -> vector<2x8x8xf32>
    "tpu.trace_stop"() : () -> ()
    %37 = vector.shape_cast %36 : vector<2x8x8xf32> to vector<16x8xf32>
    %c0_16 = arith.constant 0 : index
    %c0_17 = arith.constant 0 : index
    %38 = vector.load %arg3[%c0_16, %c0_17] : memref<32x32xf32, #tpu.memory_space<vmem>>, vector<8x32xf32>
    %cst_18 = arith.constant dense<0.000000e+00> : vector<16x32xf32>
    %39 = tpu.matmul %37, %38, %cst_18 {dimension_numbers = #tpu.dot_dimension_numbers<[1], [0], [0], [1], [0, 0, 1, 1], [], []>} : vector<16x8xf32>, vector<8x32xf32>, vector<16x32xf32> -> vector<16x32xf32>
    %40 = arith.addf %11, %39 : vector<16x32xf32>
    %41 = vector.extract_strided_slice %8 {offsets = [0, 8], sizes = [16, 8], strides = [1, 1]} : vector<16x32xf32> to vector<16x8xf32>
    %42 = vector.shape_cast %41 : vector<16x8xf32> to vector<2x8x8xf32>
    %43 = vector.extract_strided_slice %9 {offsets = [0, 8], sizes = [16, 8], strides = [1, 1]} : vector<16x32xf32> to vector<16x8xf32>
    %44 = vector.shape_cast %43 : vector<16x8xf32> to vector<2x8x8xf32>
    %45 = vector.extract_strided_slice %10 {offsets = [0, 8], sizes = [16, 8], strides = [1, 1]} : vector<16x32xf32> to vector<16x8xf32>
    %46 = vector.shape_cast %45 : vector<16x8xf32> to vector<2x8x8xf32>
    "tpu.trace_start"() <{level = 10 : i32, message = "bqd,bkd->bqk"}> : () -> ()
    %cst_19 = arith.constant dense<0.000000e+00> : vector<2x8x8xf32>
    %47 = tpu.matmul %42, %44, %cst_19 {dimension_numbers = #tpu.dot_dimension_numbers<[2], [2], [1], [1], [0, 0, 0, 1, 1, 1], [0], [0]>} : vector<2x8x8xf32>, vector<2x8x8xf32>, vector<2x8x8xf32> -> vector<2x8x8xf32>
    "tpu.trace_stop"() : () -> ()
    %cst_20 = arith.constant dense<0xFF800000> : vector<2x8xf32>
    %48 = vector.multi_reduction <maximumf>, %47, %cst_20 [2] : vector<2x8x8xf32> to vector<2x8xf32>
    %49 = vector.shape_cast %48 : vector<2x8xf32> to vector<2x8x1xf32>
    %50 = vector.broadcast %49 : vector<2x8x1xf32> to vector<2x8x8xf32>
    %51 = arith.subf %47, %50 : vector<2x8x8xf32>
    %52 = math.exp %51 : vector<2x8x8xf32>
    %cst_21 = arith.constant dense<0.000000e+00> : vector<2x8xf32>
    %53 = vector.multi_reduction <add>, %52, %cst_21 [2] : vector<2x8x8xf32> to vector<2x8xf32>
    %54 = vector.shape_cast %53 : vector<2x8xf32> to vector<2x8x1xf32>
    %55 = tpu.reciprocal %54 {approx = true} : vector<2x8x1xf32> -> vector<2x8x1xf32>
    %56 = arith.mulf %54, %55 : vector<2x8x1xf32>
    %cst_22 = arith.constant 2.000000e+00 : f32
    %57 = vector.broadcast %cst_22 : f32 to vector<2x8x1xf32>
    %58 = arith.subf %57, %56 : vector<2x8x1xf32>
    %59 = arith.mulf %55, %58 : vector<2x8x1xf32>
    %60 = vector.broadcast %59 : vector<2x8x1xf32> to vector<2x8x8xf32>
    %61 = arith.mulf %52, %60 : vector<2x8x8xf32>
    %c0_23 = arith.constant 0 : index
    %c1 = arith.constant 1 : index
    %c0_24 = arith.constant 0 : index
    %c0_25 = arith.constant 0 : index
    %62 = vector.load %arg6[%c0_23, %c1, %c0_24, %c0_25] : memref<2x4x8x8xf32, #tpu.memory_space<vmem>>, vector<2x1x8x8xf32>
    %63 = vector.shape_cast %62 : vector<2x1x8x8xf32> to vector<2x8x8xf32>
    %64 = vector.shape_cast %61 : vector<2x8x8xf32> to vector<2x1x8x8xf32>
    tpu.vector_store %arg6[%c0_23, %c1, %c0_24, %c0_25], %64 {strides = array<i32>} : memref<2x4x8x8xf32, #tpu.memory_space<vmem>>, vector<2x1x8x8xf32>,
    "tpu.trace_start"() <{level = 10 : i32, message = "bqk,bkd->bqd"}> : () -> ()
    %cst_26 = arith.constant dense<0.000000e+00> : vector<2x8x8xf32>
    %65 = tpu.matmul %61, %46, %cst_26 {dimension_numbers = #tpu.dot_dimension_numbers<[2], [1], [1], [2], [0, 0, 0, 1, 1, 2], [0], [0]>} : vector<2x8x8xf32>, vector<2x8x8xf32>, vector<2x8x8xf32> -> vector<2x8x8xf32>
    "tpu.trace_stop"() : () -> ()
    %66 = vector.shape_cast %65 : vector<2x8x8xf32> to vector<16x8xf32>
    %c8 = arith.constant 8 : index
    %c0_27 = arith.constant 0 : index
    %67 = vector.load %arg3[%c8, %c0_27] : memref<32x32xf32, #tpu.memory_space<vmem>>, vector<8x32xf32>
    %cst_28 = arith.constant dense<0.000000e+00> : vector<16x32xf32>
    %68 = tpu.matmul %66, %67, %cst_28 {dimension_numbers = #tpu.dot_dimension_numbers<[1], [0], [0], [1], [0, 0, 1, 1], [], []>} : vector<16x8xf32>, vector<8x32xf32>, vector<16x32xf32> -> vector<16x32xf32>
    %69 = arith.addf %40, %68 : vector<16x32xf32>
    %70 = vector.extract_strided_slice %8 {offsets = [0, 16], sizes = [16, 8], strides = [1, 1]} : vector<16x32xf32> to vector<16x8xf32>
    %71 = vector.shape_cast %70 : vector<16x8xf32> to vector<2x8x8xf32>
    %72 = vector.extract_strided_slice %9 {offsets = [0, 16], sizes = [16, 8], strides = [1, 1]} : vector<16x32xf32> to vector<16x8xf32>
    %73 = vector.shape_cast %72 : vector<16x8xf32> to vector<2x8x8xf32>
    %74 = vector.extract_strided_slice %10 {offsets = [0, 16], sizes = [16, 8], strides = [1, 1]} : vector<16x32xf32> to vector<16x8xf32>
    %75 = vector.shape_cast %74 : vector<16x8xf32> to vector<2x8x8xf32>
    "tpu.trace_start"() <{level = 10 : i32, message = "bqd,bkd->bqk"}> : () -> ()
    %cst_29 = arith.constant dense<0.000000e+00> : vector<2x8x8xf32>
    %76 = tpu.matmul %71, %73, %cst_29 {dimension_numbers = #tpu.dot_dimension_numbers<[2], [2], [1], [1], [0, 0, 0, 1, 1, 1], [0], [0]>} : vector<2x8x8xf32>, vector<2x8x8xf32>, vector<2x8x8xf32> -> vector<2x8x8xf32>
    "tpu.trace_stop"() : () -> ()
    %cst_30 = arith.constant dense<0xFF800000> : vector<2x8xf32>
    %77 = vector.multi_reduction <maximumf>, %76, %cst_30 [2] : vector<2x8x8xf32> to vector<2x8xf32>
    %78 = vector.shape_cast %77 : vector<2x8xf32> to vector<2x8x1xf32>
    %79 = vector.broadcast %78 : vector<2x8x1xf32> to vector<2x8x8xf32>
    %80 = arith.subf %76, %79 : vector<2x8x8xf32>
    %81 = math.exp %80 : vector<2x8x8xf32>
    %cst_31 = arith.constant dense<0.000000e+00> : vector<2x8xf32>
    %82 = vector.multi_reduction <add>, %81, %cst_31 [2] : vector<2x8x8xf32> to vector<2x8xf32>
    %83 = vector.shape_cast %82 : vector<2x8xf32> to vector<2x8x1xf32>
    %84 = tpu.reciprocal %83 {approx = true} : vector<2x8x1xf32> -> vector<2x8x1xf32>
    %85 = arith.mulf %83, %84 : vector<2x8x1xf32>
    %cst_32 = arith.constant 2.000000e+00 : f32
    %86 = vector.broadcast %cst_32 : f32 to vector<2x8x1xf32>
    %87 = arith.subf %86, %85 : vector<2x8x1xf32>
    %88 = arith.mulf %84, %87 : vector<2x8x1xf32>
    %89 = vector.broadcast %88 : vector<2x8x1xf32> to vector<2x8x8xf32>
    %90 = arith.mulf %81, %89 : vector<2x8x8xf32>
    %c0_33 = arith.constant 0 : index
    %c2 = arith.constant 2 : index
    %c0_34 = arith.constant 0 : index
    %c0_35 = arith.constant 0 : index
    %91 = vector.load %arg6[%c0_33, %c2, %c0_34, %c0_35] : memref<2x4x8x8xf32, #tpu.memory_space<vmem>>, vector<2x1x8x8xf32>
    %92 = vector.shape_cast %91 : vector<2x1x8x8xf32> to vector<2x8x8xf32>
    %93 = vector.shape_cast %90 : vector<2x8x8xf32> to vector<2x1x8x8xf32>
    tpu.vector_store %arg6[%c0_33, %c2, %c0_34, %c0_35], %93 {strides = array<i32>} : memref<2x4x8x8xf32, #tpu.memory_space<vmem>>, vector<2x1x8x8xf32>,
    "tpu.trace_start"() <{level = 10 : i32, message = "bqk,bkd->bqd"}> : () -> ()
    %cst_36 = arith.constant dense<0.000000e+00> : vector<2x8x8xf32>
    %94 = tpu.matmul %90, %75, %cst_36 {dimension_numbers = #tpu.dot_dimension_numbers<[2], [1], [1], [2], [0, 0, 0, 1, 1, 2], [0], [0]>} : vector<2x8x8xf32>, vector<2x8x8xf32>, vector<2x8x8xf32> -> vector<2x8x8xf32>
    "tpu.trace_stop"() : () -> ()
    %95 = vector.shape_cast %94 : vector<2x8x8xf32> to vector<16x8xf32>
    %c16 = arith.constant 16 : index
    %c0_37 = arith.constant 0 : index
    %96 = vector.load %arg3[%c16, %c0_37] : memref<32x32xf32, #tpu.memory_space<vmem>>, vector<8x32xf32>
    %cst_38 = arith.constant dense<0.000000e+00> : vector<16x32xf32>
    %97 = tpu.matmul %95, %96, %cst_38 {dimension_numbers = #tpu.dot_dimension_numbers<[1], [0], [0], [1], [0, 0, 1, 1], [], []>} : vector<16x8xf32>, vector<8x32xf32>, vector<16x32xf32> -> vector<16x32xf32>
    %98 = arith.addf %69, %97 : vector<16x32xf32>
    %99 = vector.extract_strided_slice %8 {offsets = [0, 24], sizes = [16, 8], strides = [1, 1]} : vector<16x32xf32> to vector<16x8xf32>
    %100 = vector.shape_cast %99 : vector<16x8xf32> to vector<2x8x8xf32>
    %101 = vector.extract_strided_slice %9 {offsets = [0, 24], sizes = [16, 8], strides = [1, 1]} : vector<16x32xf32> to vector<16x8xf32>
    %102 = vector.shape_cast %101 : vector<16x8xf32> to vector<2x8x8xf32>
    %103 = vector.extract_strided_slice %10 {offsets = [0, 24], sizes = [16, 8], strides = [1, 1]} : vector<16x32xf32> to vector<16x8xf32>
    %104 = vector.shape_cast %103 : vector<16x8xf32> to vector<2x8x8xf32>
    "tpu.trace_start"() <{level = 10 : i32, message = "bqd,bkd->bqk"}> : () -> ()
    %cst_39 = arith.constant dense<0.000000e+00> : vector<2x8x8xf32>
    %105 = tpu.matmul %100, %102, %cst_39 {dimension_numbers = #tpu.dot_dimension_numbers<[2], [2], [1], [1], [0, 0, 0, 1, 1, 1], [0], [0]>} : vector<2x8x8xf32>, vector<2x8x8xf32>, vector<2x8x8xf32> -> vector<2x8x8xf32>
    "tpu.trace_stop"() : () -> ()
    %cst_40 = arith.constant dense<0xFF800000> : vector<2x8xf32>
    %106 = vector.multi_reduction <maximumf>, %105, %cst_40 [2] : vector<2x8x8xf32> to vector<2x8xf32>
    %107 = vector.shape_cast %106 : vector<2x8xf32> to vector<2x8x1xf32>
    %108 = vector.broadcast %107 : vector<2x8x1xf32> to vector<2x8x8xf32>
    %109 = arith.subf %105, %108 : vector<2x8x8xf32>
    %110 = math.exp %109 : vector<2x8x8xf32>
    %cst_41 = arith.constant dense<0.000000e+00> : vector<2x8xf32>
    %111 = vector.multi_reduction <add>, %110, %cst_41 [2] : vector<2x8x8xf32> to vector<2x8xf32>
    %112 = vector.shape_cast %111 : vector<2x8xf32> to vector<2x8x1xf32>
    %113 = tpu.reciprocal %112 {approx = true} : vector<2x8x1xf32> -> vector<2x8x1xf32>
    %114 = arith.mulf %112, %113 : vector<2x8x1xf32>
    %cst_42 = arith.constant 2.000000e+00 : f32
    %115 = vector.broadcast %cst_42 : f32 to vector<2x8x1xf32>
    %116 = arith.subf %115, %114 : vector<2x8x1xf32>
    %117 = arith.mulf %113, %116 : vector<2x8x1xf32>
    %118 = vector.broadcast %117 : vector<2x8x1xf32> to vector<2x8x8xf32>
    %119 = arith.mulf %110, %118 : vector<2x8x8xf32>
    %c0_43 = arith.constant 0 : index
    %c3 = arith.constant 3 : index
    %c0_44 = arith.constant 0 : index
    %c0_45 = arith.constant 0 : index
    %120 = vector.load %arg6[%c0_43, %c3, %c0_44, %c0_45] : memref<2x4x8x8xf32, #tpu.memory_space<vmem>>, vector<2x1x8x8xf32>
    %121 = vector.shape_cast %120 : vector<2x1x8x8xf32> to vector<2x8x8xf32>
    %122 = vector.shape_cast %119 : vector<2x8x8xf32> to vector<2x1x8x8xf32>
    tpu.vector_store %arg6[%c0_43, %c3, %c0_44, %c0_45], %122 {strides = array<i32>} : memref<2x4x8x8xf32, #tpu.memory_space<vmem>>, vector<2x1x8x8xf32>,
    "tpu.trace_start"() <{level = 10 : i32, message = "bqk,bkd->bqd"}> : () -> ()
    %cst_46 = arith.constant dense<0.000000e+00> : vector<2x8x8xf32>
    %123 = tpu.matmul %119, %104, %cst_46 {dimension_numbers = #tpu.dot_dimension_numbers<[2], [1], [1], [2], [0, 0, 0, 1, 1, 2], [0], [0]>} : vector<2x8x8xf32>, vector<2x8x8xf32>, vector<2x8x8xf32> -> vector<2x8x8xf32>
    "tpu.trace_stop"() : () -> ()
    %124 = vector.shape_cast %123 : vector<2x8x8xf32> to vector<16x8xf32>
    %c24 = arith.constant 24 : index
    %c0_47 = arith.constant 0 : index
    %125 = vector.load %arg3[%c24, %c0_47] : memref<32x32xf32, #tpu.memory_space<vmem>>, vector<8x32xf32>
    %cst_48 = arith.constant dense<0.000000e+00> : vector<16x32xf32>
    %126 = tpu.matmul %124, %125, %cst_48 {dimension_numbers = #tpu.dot_dimension_numbers<[1], [0], [0], [1], [0, 0, 1, 1], [], []>} : vector<16x8xf32>, vector<8x32xf32>, vector<16x32xf32> -> vector<16x32xf32>
    %127 = arith.addf %98, %126 : vector<16x32xf32>
    %c0_49 = arith.constant 0 : index
    %c0_50 = arith.constant 0 : index
    %128 = vector.load %arg4[%c0_49, %c0_50] : memref<1x32xf32, #tpu.memory_space<vmem>>, vector<1x32xf32>
    %129 = vector.broadcast %128 : vector<1x32xf32> to vector<16x32xf32>
    %130 = arith.addf %127, %129 : vector<16x32xf32>
    %c0_51 = arith.constant 0 : index
    %c0_52 = arith.constant 0 : index
    %131 = vector.load %arg5[%c0_51, %c0_52] : memref<16x32xf32, #tpu.memory_space<vmem>>, vector<16x32xf32>
    tpu.vector_store %arg5[%c0_51, %c0_52], %130 {strides = array<i32>} : memref<16x32xf32, #tpu.memory_space<vmem>>, vector<16x32xf32>,
    return
  }
}

</mosaic_0001>

<llo_original>
// kernel: attention_forward.1
$region0: #{attention_forward.1}
  #allocation0 [shape = 'u32[]', space=smem, size = 0x4, offset = 0x4, fixed_abs, tag = 'smem constant byte address 0x4 - core index']
  #allocation1 [shape = 'u32[144,128]{1,0:T(1,128)}', space=vmem, size = 0x12000, scoped, tag = 'internal scratch']
  %s0 = inlined_call_operand.hbm [shape: f32[16,32], index: 0, kind: input, shape index: {}]
  %s1 = inlined_call_operand.hbm [shape: f32[32,96], index: 1, kind: input, shape index: {}]
  %s2 = inlined_call_operand.vmem [shape: f32[1,96], index: 2, kind: input, shape index: {}]
  %s3 = inlined_call_operand.hbm [shape: f32[32,32], index: 3, kind: input, shape index: {}]
  %s4 = inlined_call_operand.vmem [shape: f32[1,32], index: 4, kind: input, shape index: {}]
  %s5 = inlined_call_operand.hbm [shape: f32[16,32], index: 5, kind: output, shape index: {0}]
  %s6 = inlined_call_operand.hbm [shape: f32[2,4,8,8], index: 6, kind: output, shape index: {1}]
  %7 = xla_tuple %s5, %s6
  %s8 = sld [smem:[#allocation0]]
  $region50: #{attention_forward.1} parent=0
    _
  %s10 = ssub.s32 1, %s8
  %s11 = scalar_select 0, %s10, %s8
  $region1: #{attention_forward.1} parent=0
    #allocation2 [shape = 'u8[8192]{0}', space=vmem, size = 0x2000, scoped, tag = 'input window, operand 0, single buffered']
    #allocation3 [shape = 's32[1]{0}', space=sflag, size = 0x4, scoped, tag = 'scoped memory for attention_forward.1']
    #allocation4 [shape = 's32[1]{0}', space=sflag, size = 0x4, scoped, tag = 'scoped memory for attention_forward.1']
    #allocation5 [shape = 'u8[16384]{0}', space=vmem, size = 0x4000, scoped, tag = 'input window, operand 1, single buffered']
    #allocation6 [shape = 's32[1]{0}', space=sflag, size = 0x4, scoped, tag = 'scoped memory for attention_forward.1']
    #allocation7 [shape = 'u8[16384]{0}', space=vmem, size = 0x4000, scoped, tag = 'input window, operand 3, single buffered']
    #allocation8 [shape = 'u8[8192]{0}', space=vmem, size = 0x2000, scoped, tag = 'output window, operand 0, single buffered']
    #allocation9 [shape = 'u8[32768]{0}', space=vmem, size = 0x8000, scoped, tag = 'output window, operand 1, single buffered']
    #allocation10 [shape = 's32[1]{0}', space=sflag, size = 0x4, scoped, tag = 'scoped memory for attention_forward.1']
    %12 = vsyncpa [#allocation3], 0
    %13 = vsyncpa [#allocation6], 0
    %14 = vsyncpa [#allocation4], 0
    %15 = vsyncpa [#allocation10], 0
    // Predicated region
    $region2: #{attention_forward.1} parent=1 // pred_check
      _
    $region3: #{attention_forward.1} parent=1 // pred_check_branch
      %17 = sbr.rel (0) target = $region5
    $region4: #{attention_forward.1} parent=1 // pred_region
      %s19 = ssub.s32 256, 256
      %20 = vsyncadd [#allocation3], %s19
      %s21 = sshll.u32 [#allocation2], 4
      %s22 = int_to_ptr.vmem [resolvable:$true] %s21
      %27 = dma.hbm_to_vmem [thread:$0]  %s0, 256, %s22, [#allocation3], 128, 128, 8
    $region5: #{attention_forward.1} parent=1 // pred_fallthru
      _
    // Predicated region
    $region6: #{attention_forward.1} parent=1 // pred_check
      _
    $region7: #{attention_forward.1} parent=1 // pred_check_branch
      %29 = sbr.rel (0) target = $region9
    $region8: #{attention_forward.1} parent=1 // pred_region
      %s31 = ssub.s32 512, 512
      %32 = vsyncadd [#allocation6], %s31
      %s33 = sshll.u32 [#allocation5], 4
      %s34 = int_to_ptr.vmem [resolvable:$true] %s33
      %39 = dma.hbm_to_vmem [thread:$0]  %s1, 512, %s34, [#allocation6], 128, 128, 8
    $region9: #{attention_forward.1} parent=1 // pred_fallthru
      _
    // Predicated region
    $region10: #{attention_forward.1} parent=1 // pred_check
      _
    $region11: #{attention_forward.1} parent=1 // pred_check_branch
      %41 = sbr.rel (0) target = $region13
    $region12: #{attention_forward.1} parent=1 // pred_region
      _
    $region13: #{attention_forward.1} parent=1 // pred_fallthru
      _
    // Predicated region
    $region14: #{attention_forward.1} parent=1 // pred_check
      _
    $region15: #{attention_forward.1} parent=1 // pred_check_branch
      %43 = sbr.rel (0) target = $region17
    $region16: #{attention_forward.1} parent=1 // pred_region
      %s45 = ssub.s32 512, 512
      %46 = vsyncadd [#allocation6], %s45
      %s47 = sshll.u32 [#allocation7], 4
      %s48 = int_to_ptr.vmem [resolvable:$true] %s47
      %53 = dma.hbm_to_vmem [thread:$0]  %s3, 512, %s48, [#allocation6], 128, 128, 8
    $region17: #{attention_forward.1} parent=1 // pred_fallthru
      _
    // Predicated region
    $region18: #{attention_forward.1} parent=1 // pred_check
      _
    $region19: #{attention_forward.1} parent=1 // pred_check_branch
      %55 = sbr.rel (0) target = $region21
    $region20: #{attention_forward.1} parent=1 // pred_region
      _
    $region21: #{attention_forward.1} parent=1 // pred_fallthru
      _
    // Predicated region
    $region22: #{attention_forward.1} parent=1 // pred_check
      _
    $region23: #{attention_forward.1} parent=1 // pred_check_branch
      %57 = sbr.rel (0) target = $region25
    $region24: #{attention_forward.1} parent=1 // pred_region
      %58 = dma.done [#allocation3], 256
    $region25: #{attention_forward.1} parent=1 // pred_fallthru
      _
    // Predicated region
    $region26: #{attention_forward.1} parent=1 // pred_check
      _
    $region27: #{attention_forward.1} parent=1 // pred_check_branch
      %60 = sbr.rel (0) target = $region29
    $region28: #{attention_forward.1} parent=1 // pred_region
      %61 = dma.done [#allocation6], 512
    $region29: #{attention_forward.1} parent=1 // pred_fallthru
      _
    // Predicated region
    $region30: #{attention_forward.1} parent=1 // pred_check
      _
    $region31: #{attention_forward.1} parent=1 // pred_check_branch
      %63 = sbr.rel (0) target = $region33
    $region32: #{attention_forward.1} parent=1 // pred_region
      %64 = dma.done [#allocation6], 512
    $region33: #{attention_forward.1} parent=1 // pred_fallthru
      _
    %v65 = vld [vmem:[#allocation2] sm:$0xff]
    %v66 = vld [vmem:[#allocation2 + $0x8] sm:$0xff]
    %v67 = vld [vmem:[#allocation5] sm:$0xff]
    %v68 = vld [vmem:[#allocation5 + $0x8] sm:$0xff]
    %v69 = vld [vmem:[#allocation5 + $0x10] sm:$0xff]
    %v70 = vld [vmem:[#allocation5 + $0x18] sm:$0xff]
    %v71 = vld [vmem:[%s2] sm:$0x1]
    %v73 = vlaneseq
    %v74 = vshrl.u32 %v73, 7
    %v75 = vsub.s32 0, %v74
    %v76 = vrot.slane %v71, %v75
    %vm78 = vcmask 261120
    %v80 = vsel %vm78, %v65, 0
    %v83 = vsel %vm78, %v66, 0
    %85 = vmatprep.subr.mxu0 0.0
    %86 = vmatpush1.msra.mxu0 %v67
    %87 = vmatprep.subr.mxu0 0.0
    %88 = vmatpush1.msra.mxu0 %v68
    %89 = vmatprep.subr.mxu0 0.0
    %90 = vmatpush1.msra.mxu0 %v69
    %91 = vmatprep.subr.mxu0 0.0
    %92 = vmatpush1.msra.mxu0 %v70
    %93 = vmatprep.subr.mxu0 0.0
    %94 = vmatpush1.msra.mxu0 0.0
    %95 = vmatprep.subr.mxu0 0.0
    %96 = vmatpush1.msra.mxu0 0.0
    %97 = vmatprep.subr.mxu0 0.0
    %98 = vmatpush1.msra.mxu0 0.0
    %99 = vmatprep.subr.mxu0 0.0
    %100 = vmatpush1.msra.mxu0 0.0
    %101 = vmatprep.subr.mxu0 0.0
    %102 = vmatpush1.msra.mxu0 0.0
    %103 = vmatprep.subr.mxu0 0.0
    %104 = vmatpush1.msra.mxu0 0.0
    %105 = vmatprep.subr.mxu0 0.0
    %106 = vmatpush1.msra.mxu0 0.0
    %107 = vmatprep.subr.mxu0 0.0
    %108 = vmatpush1.msra.mxu0 0.0
    %109 = vmatprep.subr.mxu0 0.0
    %110 = vmatpush1.msra.mxu0 0.0
    %111 = vmatprep.subr.mxu0 0.0
    %112 = vmatpush1.msra.mxu0 0.0
    %113 = vmatprep.subr.mxu0 0.0
    %114 = vmatpush1.msra.mxu0 0.0
    %115 = vmatprep.subr.mxu0 0.0
    %116 = vmatpush1.msra.mxu0 0.0
    %117 = vmatprep.subr.mxu0 0.0
    %118 = vmatpush1.msra.mxu0 0.0
    %119 = vmatprep.subr.mxu0 0.0
    %120 = vmatpush1.msra.mxu0 0.0
    %121 = vmatprep.subr.mxu0 0.0
    %122 = vmatpush1.msra.mxu0 0.0
    %123 = vmatprep.subr.mxu0 0.0
    %124 = vmatpush1.msra.mxu0 0.0
    %125 = vmatprep.subr.mxu0 0.0
    %126 = vmatpush1.msra.mxu0 0.0
    %127 = vmatprep.subr.mxu0 0.0
    %128 = vmatpush1.msra.mxu0 0.0
    %129 = vmatprep.subr.mxu0 0.0
    %130 = vmatpush1.msra.mxu0 0.0
    %131 = vmatprep.subr.mxu0 0.0
    %132 = vmatpush1.msra.mxu0 0.0
    %133 = vmatprep.subr.mxu0 0.0
    %134 = vmatpush1.msra.mxu0 0.0
    %135 = vmatprep.subr.mxu0 0.0
    %136 = vmatpush1.msra.mxu0 0.0
    %137 = vmatprep.subr.mxu0 0.0
    %138 = vmatpush1.msra.mxu0 0.0
    %139 = vmatprep.subr.mxu0 0.0
    %140 = vmatpush1.msra.mxu0 0.0
    %141 = vmatprep.subr.mxu0 0.0
    %142 = vmatpush1.msra.mxu0 0.0
    %143 = vmatprep.subr.mxu0 0.0
    %144 = vmatpush1.msra.mxu0 0.0
    %145 = vmatprep.subr.mxu0 0.0
    %146 = vmatpush1.msra.mxu0 0.0
    %147 = vmatprep.subr.mxu0 0.0
    %148 = vmatpush1.msra.mxu0 0.0
    %149 = vmatprep.mubr.f32.mxu0 0.0
    %150 = vmatmul.mubr.f32.gmra.mrb[0].mxu0 %v80
    %v151 = vpop.f32.mrb[0].mxu0
    %v152 = vadd.f32 %v76, %v151
    %v153 = vpop.f32.mrb[0].mxu0
    %154 = vmatprep.mubr.f32.mxu0 0.0
    %155 = vmatmul.mubr.f32.gmra.mrb[0].mxu0 %v83
    %v156 = vpop.f32.mrb[0].mxu0
    %v157 = vadd.f32 %v76, %v156
    %v158 = vpop.f32.mrb[0].mxu0
    %159 = vdwg.mxu0
    %v160 = vmul.f32 %v152, 0.35355338
    %v161 = vmul.f32 %v157, 0.35355338
    %163 = vrot.lane.b32.xlu0 %v152, 96
    %v164 = vpop.permute.xlu0 %163
    %vm165 = vcmask 64512
    %v167 = vsel %vm165, %v160, 0
    %v169 = vsel %vm165, %v164, 0
    %171 = vmatprep.subr.mxu0 0.0
    %172 = vmatpush1.xpose.msra.mxu0 %v169
    %173 = vmatprep.subr.mxu0 0.0
    %174 = vmatpush1.xpose.msra.mxu0 0.0
    %175 = vmatprep.subr.mxu0 0.0
    %176 = vmatpush1.xpose.msra.mxu0 0.0
    %177 = vmatprep.subr.mxu0 0.0
    %178 = vmatpush1.xpose.msra.mxu0 0.0
    %179 = vmatprep.subr.mxu0 0.0
    %180 = vmatpush1.xpose.msra.mxu0 0.0
    %181 = vmatprep.subr.mxu0 0.0
    %182 = vmatpush1.xpose.msra.mxu0 0.0
    %183 = vmatprep.subr.mxu0 0.0
    %184 = vmatpush1.xpose.msra.mxu0 0.0
    %185 = vmatprep.subr.mxu0 0.0
    %186 = vmatpush1.xpose.msra.mxu0 0.0
    %187 = vmatprep.subr.mxu0 0.0
    %188 = vmatpush1.xpose.msra.mxu0 0.0
    %189 = vmatprep.subr.mxu0 0.0
    %190 = vmatpush1.xpose.msra.mxu0 0.0
    %191 = vmatprep.subr.mxu0 0.0
    %192 = vmatpush1.xpose.msra.mxu0 0.0
    %193 = vmatprep.subr.mxu0 0.0
    %194 = vmatpush1.xpose.msra.mxu0 0.0
    %195 = vmatprep.subr.mxu0 0.0
    %196 = vmatpush1.xpose.msra.mxu0 0.0
    %197 = vmatprep.subr.mxu0 0.0
    %198 = vmatpush1.xpose.msra.mxu0 0.0
    %199 = vmatprep.subr.mxu0 0.0
    %200 = vmatpush1.xpose.msra.mxu0 0.0
    %201 = vmatprep.subr.mxu0 0.0
    %202 = vmatpush1.xpose.msra.mxu0 0.0
    %203 = vmatprep.subr.mxu0 0.0
    %204 = vmatpush1.xpose.msra.mxu0 0.0
    %205 = vmatprep.subr.mxu0 0.0
    %206 = vmatpush1.xpose.msra.mxu0 0.0
    %207 = vmatprep.subr.mxu0 0.0
    %208 = vmatpush1.xpose.msra.mxu0 0.0
    %209 = vmatprep.subr.mxu0 0.0
    %210 = vmatpush1.xpose.msra.mxu0 0.0
    %211 = vmatprep.subr.mxu0 0.0
    %212 = vmatpush1.xpose.msra.mxu0 0.0
    %213 = vmatprep.subr.mxu0 0.0
    %214 = vmatpush1.xpose.msra.mxu0 0.0
    %215 = vmatprep.subr.mxu0 0.0
    %216 = vmatpush1.xpose.msra.mxu0 0.0
    %217 = vmatprep.subr.mxu0 0.0
    %218 = vmatpush1.xpose.msra.mxu0 0.0
    %219 = vmatprep.subr.mxu0 0.0
    %220 = vmatpush1.xpose.msra.mxu0 0.0
    %221 = vmatprep.subr.mxu0 0.0
    %222 = vmatpush1.xpose.msra.mxu0 0.0
    %223 = vmatprep.subr.mxu0 0.0
    %224 = vmatpush1.xpose.msra.mxu0 0.0
    %225 = vmatprep.subr.mxu0 0.0
    %226 = vmatpush1.xpose.msra.mxu0 0.0
    %227 = vmatprep.subr.mxu0 0.0
    %228 = vmatpush1.xpose.msra.mxu0 0.0
    %229 = vmatprep.subr.mxu0 0.0
    %230 = vmatpush1.xpose.msra.mxu0 0.0
    %231 = vmatprep.subr.mxu0 0.0
    %232 = vmatpush1.xpose.msra.mxu0 0.0
    %233 = vmatprep.subr.mxu0 0.0
    %234 = vmatpush1.xpose.msra.mxu0 0.0
    %235 = vmatprep.mubr.f32.mxu0 0.0
    %236 = vmatmul.mubr.f32.gmra.mrb[0].mxu0 %v167
    %v237 = vpop.f32.mrb[0].mxu0
    %v238 = vadd.f32 0.0, %v237
    %v239 = vpop.f32.mrb[0].mxu0
    %240 = vdwg.mxu0
    %242 = vrot.lane.b32.xlu0 %v157, 96
    %v243 = vpop.permute.xlu0 %242
    %v245 = vsel %vm165, %v161, 0
    %v247 = vsel %vm165, %v243, 0
    %249 = vmatprep.subr.mxu0 0.0
    %250 = vmatpush1.xpose.msra.mxu0 %v247
    %251 = vmatprep.subr.mxu0 0.0
    %252 = vmatpush1.xpose.msra.mxu0 0.0
    %253 = vmatprep.subr.mxu0 0.0
    %254 = vmatpush1.xpose.msra.mxu0 0.0
    %255 = vmatprep.subr.mxu0 0.0
    %256 = vmatpush1.xpose.msra.mxu0 0.0
    %257 = vmatprep.subr.mxu0 0.0
    %258 = vmatpush1.xpose.msra.mxu0 0.0
    %259 = vmatprep.subr.mxu0 0.0
    %260 = vmatpush1.xpose.msra.mxu0 0.0
    %261 = vmatprep.subr.mxu0 0.0
    %262 = vmatpush1.xpose.msra.mxu0 0.0
    %263 = vmatprep.subr.mxu0 0.0
    %264 = vmatpush1.xpose.msra.mxu0 0.0
    %265 = vmatprep.subr.mxu0 0.0
    %266 = vmatpush1.xpose.msra.mxu0 0.0
    %267 = vmatprep.subr.mxu0 0.0
    %268 = vmatpush1.xpose.msra.mxu0 0.0
    %269 = vmatprep.subr.mxu0 0.0
    %270 = vmatpush1.xpose.msra.mxu0 0.0
    %271 = vmatprep.subr.mxu0 0.0
    %272 = vmatpush1.xpose.msra.mxu0 0.0
    %273 = vmatprep.subr.mxu0 0.0
    %274 = vmatpush1.xpose.msra.mxu0 0.0
    %275 = vmatprep.subr.mxu0 0.0
    %276 = vmatpush1.xpose.msra.mxu0 0.0
    %277 = vmatprep.subr.mxu0 0.0
    %278 = vmatpush1.xpose.msra.mxu0 0.0
    %279 = vmatprep.subr.mxu0 0.0
    %280 = vmatpush1.xpose.msra.mxu0 0.0
    %281 = vmatprep.subr.mxu0 0.0
    %282 = vmatpush1.xpose.msra.mxu0 0.0
    %283 = vmatprep.subr.mxu0 0.0
    %284 = vmatpush1.xpose.msra.mxu0 0.0
    %285 = vmatprep.subr.mxu0 0.0
    %286 = vmatpush1.xpose.msra.mxu0 0.0
    %287 = vmatprep.subr.mxu0 0.0
    %288 = vmatpush1.xpose.msra.mxu0 0.0
    %289 = vmatprep.subr.mxu0 0.0
    %290 = vmatpush1.xpose.msra.mxu0 0.0
    %291 = vmatprep.subr.mxu0 0.0
    %292 = vmatpush1.xpose.msra.mxu0 0.0
    %293 = vmatprep.subr.mxu0 0.0
    %294 = vmatpush1.xpose.msra.mxu0 0.0
    %295 = vmatprep.subr.mxu0 0.0
    %296 = vmatpush1.xpose.msra.mxu0 0.0
    %297 = vmatprep.subr.mxu0 0.0
    %298 = vmatpush1.xpose.msra.mxu0 0.0
    %299 = vmatprep.subr.mxu0 0.0
    %300 = vmatpush1.xpose.msra.mxu0 0.0
    %301 = vmatprep.subr.mxu0 0.0
    %302 = vmatpush1.xpose.msra.mxu0 0.0
    %303 = vmatprep.subr.mxu0 0.0
    %304 = vmatpush1.xpose.msra.mxu0 0.0
    %305 = vmatprep.subr.mxu0 0.0
    %306 = vmatpush1.xpose.msra.mxu0 0.0
    %307 = vmatprep.subr.mxu0 0.0
    %308 = vmatpush1.xpose.msra.mxu0 0.0
    %309 = vmatprep.subr.mxu0 0.0
    %310 = vmatpush1.xpose.msra.mxu0 0.0
    %311 = vmatprep.subr.mxu0 0.0
    %312 = vmatpush1.xpose.msra.mxu0 0.0
    %313 = vmatprep.mubr.f32.mxu0 0.0
    %314 = vmatmul.mubr.f32.gmra.mrb[0].mxu0 %v245
    %v315 = vpop.f32.mrb[0].mxu0
    %v316 = vadd.f32 0.0, %v315
    %v317 = vpop.f32.mrb[0].mxu0
    %318 = vdwg.mxu0
    %v319 = vsel %vm165, %v238, -inf
    %320 = vmax.xlane.f32.xlu0 %v319
    %v321 = vpop.xlane.xlu0 %320
    %v322 = vsel %vm165, %v316, -inf
    %323 = vmax.xlane.f32.xlu0 %v322
    %v324 = vpop.xlane.xlu0 %323
    %v325 = vsub.f32 %v238, %v321
    %v326 = vsub.f32 %v316, %v324
    %v327 = vmul.f32 %v325, 1.442695
    %v328 = vpow.pop %v327
    %v329 = vmul.f32 %v326, 1.442695
    %v330 = vpow.pop %v329
    %v331 = vsel %vm165, %v328, 0.0
    %332 = vadd.xlane.f32.xlu0 %v331
    %v333 = vpop.xlane.xlu0 %332
    %v334 = vsel %vm165, %v330, 0.0
    %335 = vadd.xlane.f32.xlu0 %v334
    %v336 = vpop.xlane.xlu0 %335
    %v337 = vrcp.pop %v333
    %v338 = vrcp.pop %v336
    %v339 = vmul.f32 %v333, %v337
    %v340 = vmul.f32 %v336, %v338
    %v341 = vsub.f32 2.0, %v339
    %v342 = vsub.f32 2.0, %v340
    %v343 = vmul.f32 %v337, %v341
    %v344 = vmul.f32 %v338, %v342
    %v345 = vmul.f32 %v328, %v343
    %v346 = vmul.f32 %v330, %v344
    %347 = vst.msk [vmem:[#allocation9] sm:$0xff] %vm165, %v345
    %348 = vst.msk [vmem:[#allocation9 + $0x20] sm:$0xff] %vm165, %v346
    %349 = vrot.lane.b32.xlu0 %v152, 64
    %v350 = vpop.permute.xlu0 %349
    %v353 = vsel %vm165, %v345, 0
    %355 = vmatprep.subr.mxu0 0.0
    %356 = vmatpush1.msra.mxu0 %v350
    %357 = vmatprep.subr.mxu0 0.0
    %358 = vmatpush1.msra.mxu0 0.0
    %359 = vmatprep.subr.mxu0 0.0
    %360 = vmatpush1.msra.mxu0 0.0
    %361 = vmatprep.subr.mxu0 0.0
    %362 = vmatpush1.msra.mxu0 0.0
    %363 = vmatprep.subr.mxu0 0.0
    %364 = vmatpush1.msra.mxu0 0.0
    %365 = vmatprep.subr.mxu0 0.0
    %366 = vmatpush1.msra.mxu0 0.0
    %367 = vmatprep.subr.mxu0 0.0
    %368 = vmatpush1.msra.mxu0 0.0
    %369 = vmatprep.subr.mxu0 0.0
    %370 = vmatpush1.msra.mxu0 0.0
    %371 = vmatprep.subr.mxu0 0.0
    %372 = vmatpush1.msra.mxu0 0.0
    %373 = vmatprep.subr.mxu0 0.0
    %374 = vmatpush1.msra.mxu0 0.0
    %375 = vmatprep.subr.mxu0 0.0
    %376 = vmatpush1.msra.mxu0 0.0
    %377 = vmatprep.subr.mxu0 0.0
    %378 = vmatpush1.msra.mxu0 0.0
    %379 = vmatprep.subr.mxu0 0.0
    %380 = vmatpush1.msra.mxu0 0.0
    %381 = vmatprep.subr.mxu0 0.0
    %382 = vmatpush1.msra.mxu0 0.0
    %383 = vmatprep.subr.mxu0 0.0
    %384 = vmatpush1.msra.mxu0 0.0
    %385 = vmatprep.subr.mxu0 0.0
    %386 = vmatpush1.msra.mxu0 0.0
    %387 = vmatprep.subr.mxu0 0.0
    %388 = vmatpush1.msra.mxu0 0.0
    %389 = vmatprep.subr.mxu0 0.0
    %390 = vmatpush1.msra.mxu0 0.0
    %391 = vmatprep.subr.mxu0 0.0
    %392 = vmatpush1.msra.mxu0 0.0
    %393 = vmatprep.subr.mxu0 0.0
    %394 = vmatpush1.msra.mxu0 0.0
    %395 = vmatprep.subr.mxu0 0.0
    %396 = vmatpush1.msra.mxu0 0.0
    %397 = vmatprep.subr.mxu0 0.0
    %398 = vmatpush1.msra.mxu0 0.0
    %399 = vmatprep.subr.mxu0 0.0
    %400 = vmatpush1.msra.mxu0 0.0
    %401 = vmatprep.subr.mxu0 0.0
    %402 = vmatpush1.msra.mxu0 0.0
    %403 = vmatprep.subr.mxu0 0.0
    %404 = vmatpush1.msra.mxu0 0.0
    %405 = vmatprep.subr.mxu0 0.0
    %406 = vmatpush1.msra.mxu0 0.0
    %407 = vmatprep.subr.mxu0 0.0
    %408 = vmatpush1.msra.mxu0 0.0
    %409 = vmatprep.subr.mxu0 0.0
    %410 = vmatpush1.msra.mxu0 0.0
    %411 = vmatprep.subr.mxu0 0.0
    %412 = vmatpush1.msra.mxu0 0.0
    %413 = vmatprep.subr.mxu0 0.0
    %414 = vmatpush1.msra.mxu0 0.0
    %415 = vmatprep.subr.mxu0 0.0
    %416 = vmatpush1.msra.mxu0 0.0
    %417 = vmatprep.subr.mxu0 0.0
    %418 = vmatpush1.msra.mxu0 0.0
    %419 = vmatprep.mubr.f32.mxu0 0.0
    %420 = vmatmul.mubr.f32.gmra.mrb[0].mxu0 %v353
    %v421 = vpop.f32.mrb[0].mxu0
    %v422 = vadd.f32 0.0, %v421
    %v423 = vpop.f32.mrb[0].mxu0
    %424 = vdwg.mxu0
    %425 = vrot.lane.b32.xlu0 %v157, 64
    %v426 = vpop.permute.xlu0 %425
    %v429 = vsel %vm165, %v346, 0
    %431 = vmatprep.subr.mxu0 0.0
    %432 = vmatpush1.msra.mxu0 %v426
    %433 = vmatprep.subr.mxu0 0.0
    %434 = vmatpush1.msra.mxu0 0.0
    %435 = vmatprep.subr.mxu0 0.0
    %436 = vmatpush1.msra.mxu0 0.0
    %437 = vmatprep.subr.mxu0 0.0
    %438 = vmatpush1.msra.mxu0 0.0
    %439 = vmatprep.subr.mxu0 0.0
    %440 = vmatpush1.msra.mxu0 0.0
    %441 = vmatprep.subr.mxu0 0.0
    %442 = vmatpush1.msra.mxu0 0.0
    %443 = vmatprep.subr.mxu0 0.0
    %444 = vmatpush1.msra.mxu0 0.0
    %445 = vmatprep.subr.mxu0 0.0
    %446 = vmatpush1.msra.mxu0 0.0
    %447 = vmatprep.subr.mxu0 0.0
    %448 = vmatpush1.msra.mxu0 0.0
    %449 = vmatprep.subr.mxu0 0.0
    %450 = vmatpush1.msra.mxu0 0.0
    %451 = vmatprep.subr.mxu0 0.0
    %452 = vmatpush1.msra.mxu0 0.0
    %453 = vmatprep.subr.mxu0 0.0
    %454 = vmatpush1.msra.mxu0 0.0
    %455 = vmatprep.subr.mxu0 0.0
    %456 = vmatpush1.msra.mxu0 0.0
    %457 = vmatprep.subr.mxu0 0.0
    %458 = vmatpush1.msra.mxu0 0.0
    %459 = vmatprep.subr.mxu0 0.0
    %460 = vmatpush1.msra.mxu0 0.0
    %461 = vmatprep.subr.mxu0 0.0
    %462 = vmatpush1.msra.mxu0 0.0
    %463 = vmatprep.subr.mxu0 0.0
    %464 = vmatpush1.msra.mxu0 0.0
    %465 = vmatprep.subr.mxu0 0.0
    %466 = vmatpush1.msra.mxu0 0.0
    %467 = vmatprep.subr.mxu0 0.0
    %468 = vmatpush1.msra.mxu0 0.0
    %469 = vmatprep.subr.mxu0 0.0
    %470 = vmatpush1.msra.mxu0 0.0
    %471 = vmatprep.subr.mxu0 0.0
    %472 = vmatpush1.msra.mxu0 0.0
    %473 = vmatprep.subr.mxu0 0.0
    %474 = vmatpush1.msra.mxu0 0.0
    %475 = vmatprep.subr.mxu0 0.0
    %476 = vmatpush1.msra.mxu0 0.0
    %477 = vmatprep.subr.mxu0 0.0
    %478 = vmatpush1.msra.mxu0 0.0
    %479 = vmatprep.subr.mxu0 0.0
    %480 = vmatpush1.msra.mxu0 0.0
    %481 = vmatprep.subr.mxu0 0.0
    %482 = vmatpush1.msra.mxu0 0.0
    %483 = vmatprep.subr.mxu0 0.0
    %484 = vmatpush1.msra.mxu0 0.0
    %485 = vmatprep.subr.mxu0 0.0
    %486 = vmatpush1.msra.mxu0 0.0
    %487 = vmatprep.subr.mxu0 0.0
    %488 = vmatpush1.msra.mxu0 0.0
    %489 = vmatprep.subr.mxu0 0.0
    %490 = vmatpush1.msra.mxu0 0.0
    %491 = vmatprep.subr.mxu0 0.0
    %492 = vmatpush1.msra.mxu0 0.0
    %493 = vmatprep.subr.mxu0 0.0
    %494 = vmatpush1.msra.mxu0 0.0
    %495 = vmatprep.mubr.f32.mxu0 0.0
    %496 = vmatmul.mubr.f32.gmra.mrb[0].mxu0 %v429
    %v497 = vpop.f32.mrb[0].mxu0
    %v498 = vadd.f32 0.0, %v497
    %v499 = vpop.f32.mrb[0].mxu0
    %500 = vdwg.mxu0
    %v501 = vld [vmem:[#allocation7] sm:$0xff]
    %502 = vrot.lane.b32.xlu0 %v160, 120
    %v503 = vpop.permute.xlu0 %502
    %504 = vrot.lane.b32.xlu0 %v152, 88
    %v505 = vpop.permute.xlu0 %504
    %v506 = vsel %vm165, %v503, 0
    %v508 = vsel %vm165, %v505, 0
    %510 = vmatprep.subr.mxu0 0.0
    %511 = vmatpush1.xpose.msra.mxu0 %v508
    %512 = vmatprep.subr.mxu0 0.0
    %513 = vmatpush1.xpose.msra.mxu0 0.0
    %514 = vmatprep.subr.mxu0 0.0
    %515 = vmatpush1.xpose.msra.mxu0 0.0
    %516 = vmatprep.subr.mxu0 0.0
    %517 = vmatpush1.xpose.msra.mxu0 0.0
    %518 = vmatprep.subr.mxu0 0.0
    %519 = vmatpush1.xpose.msra.mxu0 0.0
    %520 = vmatprep.subr.mxu0 0.0
    %521 = vmatpush1.xpose.msra.mxu0 0.0
    %522 = vmatprep.subr.mxu0 0.0
    %523 = vmatpush1.xpose.msra.mxu0 0.0
    %524 = vmatprep.subr.mxu0 0.0
    %525 = vmatpush1.xpose.msra.mxu0 0.0
    %526 = vmatprep.subr.mxu0 0.0
    %527 = vmatpush1.xpose.msra.mxu0 0.0
    %528 = vmatprep.subr.mxu0 0.0
    %529 = vmatpush1.xpose.msra.mxu0 0.0
    %530 = vmatprep.subr.mxu0 0.0
    %531 = vmatpush1.xpose.msra.mxu0 0.0
    %532 = vmatprep.subr.mxu0 0.0
    %533 = vmatpush1.xpose.msra.mxu0 0.0
    %534 = vmatprep.subr.mxu0 0.0
    %535 = vmatpush1.xpose.msra.mxu0 0.0
    %536 = vmatprep.subr.mxu0 0.0
    %537 = vmatpush1.xpose.msra.mxu0 0.0
    %538 = vmatprep.subr.mxu0 0.0
    %539 = vmatpush1.xpose.msra.mxu0 0.0
    %540 = vmatprep.subr.mxu0 0.0
    %541 = vmatpush1.xpose.msra.mxu0 0.0
    %542 = vmatprep.subr.mxu0 0.0
    %543 = vmatpush1.xpose.msra.mxu0 0.0
    %544 = vmatprep.subr.mxu0 0.0
    %545 = vmatpush1.xpose.msra.mxu0 0.0
    %546 = vmatprep.subr.mxu0 0.0
    %547 = vmatpush1.xpose.msra.mxu0 0.0
    %548 = vmatprep.subr.mxu0 0.0
    %549 = vmatpush1.xpose.msra.mxu0 0.0
    %550 = vmatprep.subr.mxu0 0.0
    %551 = vmatpush1.xpose.msra.mxu0 0.0
    %552 = vmatprep.subr.mxu0 0.0
    %553 = vmatpush1.xpose.msra.mxu0 0.0
    %554 = vmatprep.subr.mxu0 0.0
    %555 = vmatpush1.xpose.msra.mxu0 0.0
    %556 = vmatprep.subr.mxu0 0.0
    %557 = vmatpush1.xpose.msra.mxu0 0.0
    %558 = vmatprep.subr.mxu0 0.0
    %559 = vmatpush1.xpose.msra.mxu0 0.0
    %560 = vmatprep.subr.mxu0 0.0
    %561 = vmatpush1.xpose.msra.mxu0 0.0
    %562 = vmatprep.subr.mxu0 0.0
    %563 = vmatpush1.xpose.msra.mxu0 0.0
    %564 = vmatprep.subr.mxu0 0.0
    %565 = vmatpush1.xpose.msra.mxu0 0.0
    %566 = vmatprep.subr.mxu0 0.0
    %567 = vmatpush1.xpose.msra.mxu0 0.0
    %568 = vmatprep.subr.mxu0 0.0
    %569 = vmatpush1.xpose.msra.mxu0 0.0
    %570 = vmatprep.subr.mxu0 0.0
    %571 = vmatpush1.xpose.msra.mxu0 0.0
    %572 = vmatprep.subr.mxu0 0.0
    %573 = vmatpush1.xpose.msra.mxu0 0.0
    %574 = vmatprep.mubr.f32.mxu0 0.0
    %575 = vmatmul.mubr.f32.gmra.mrb[0].mxu0 %v506
    %v576 = vpop.f32.mrb[0].mxu0
    %v577 = vadd.f32 0.0, %v576
    %v578 = vpop.f32.mrb[0].mxu0
    %579 = vdwg.mxu0
    %580 = vrot.lane.b32.xlu0 %v161, 120
    %v581 = vpop.permute.xlu0 %580
    %582 = vrot.lane.b32.xlu0 %v157, 88
    %v583 = vpop.permute.xlu0 %582
    %v584 = vsel %vm165, %v581, 0
    %v586 = vsel %vm165, %v583, 0
    %588 = vmatprep.subr.mxu0 0.0
    %589 = vmatpush1.xpose.msra.mxu0 %v586
    %590 = vmatprep.subr.mxu0 0.0
    %591 = vmatpush1.xpose.msra.mxu0 0.0
    %592 = vmatprep.subr.mxu0 0.0
    %593 = vmatpush1.xpose.msra.mxu0 0.0
    %594 = vmatprep.subr.mxu0 0.0
    %595 = vmatpush1.xpose.msra.mxu0 0.0
    %596 = vmatprep.subr.mxu0 0.0
    %597 = vmatpush1.xpose.msra.mxu0 0.0
    %598 = vmatprep.subr.mxu0 0.0
    %599 = vmatpush1.xpose.msra.mxu0 0.0
    %600 = vmatprep.subr.mxu0 0.0
    %601 = vmatpush1.xpose.msra.mxu0 0.0
    %602 = vmatprep.subr.mxu0 0.0
    %603 = vmatpush1.xpose.msra.mxu0 0.0
    %604 = vmatprep.subr.mxu0 0.0
    %605 = vmatpush1.xpose.msra.mxu0 0.0
    %606 = vmatprep.subr.mxu0 0.0
    %607 = vmatpush1.xpose.msra.mxu0 0.0
    %608 = vmatprep.subr.mxu0 0.0
    %609 = vmatpush1.xpose.msra.mxu0 0.0
    %610 = vmatprep.subr.mxu0 0.0
    %611 = vmatpush1.xpose.msra.mxu0 0.0
    %612 = vmatprep.subr.mxu0 0.0
    %613 = vmatpush1.xpose.msra.mxu0 0.0
    %614 = vmatprep.subr.mxu0 0.0
    %615 = vmatpush1.xpose.msra.mxu0 0.0
    %616 = vmatprep.subr.mxu0 0.0
    %617 = vmatpush1.xpose.msra.mxu0 0.0
    %618 = vmatprep.subr.mxu0 0.0
    %619 = vmatpush1.xpose.msra.mxu0 0.0
    %620 = vmatprep.subr.mxu0 0.0
    %621 = vmatpush1.xpose.msra.mxu0 0.0
    %622 = vmatprep.subr.mxu0 0.0
    %623 = vmatpush1.xpose.msra.mxu0 0.0
    %624 = vmatprep.subr.mxu0 0.0
    %625 = vmatpush1.xpose.msra.mxu0 0.0
    %626 = vmatprep.subr.mxu0 0.0
    %627 = vmatpush1.xpose.msra.mxu0 0.0
    %628 = vmatprep.subr.mxu0 0.0
    %629 = vmatpush1.xpose.msra.mxu0 0.0
    %630 = vmatprep.subr.mxu0 0.0
    %631 = vmatpush1.xpose.msra.mxu0 0.0
    %632 = vmatprep.subr.mxu0 0.0
    %633 = vmatpush1.xpose.msra.mxu0 0.0
    %634 = vmatprep.subr.mxu0 0.0
    %635 = vmatpush1.xpose.msra.mxu0 0.0
    %636 = vmatprep.subr.mxu0 0.0
    %637 = vmatpush1.xpose.msra.mxu0 0.0
    %638 = vmatprep.subr.mxu0 0.0
    %639 = vmatpush1.xpose.msra.mxu0 0.0
    %640 = vmatprep.subr.mxu0 0.0
    %641 = vmatpush1.xpose.msra.mxu0 0.0
    %642 = vmatprep.subr.mxu0 0.0
    %643 = vmatpush1.xpose.msra.mxu0 0.0
    %644 = vmatprep.subr.mxu0 0.0
    %645 = vmatpush1.xpose.msra.mxu0 0.0
    %646 = vmatprep.subr.mxu0 0.0
    %647 = vmatpush1.xpose.msra.mxu0 0.0
    %648 = vmatprep.subr.mxu0 0.0
    %649 = vmatpush1.xpose.msra.mxu0 0.0
    %650 = vmatprep.subr.mxu0 0.0
    %651 = vmatpush1.xpose.msra.mxu0 0.0
    %652 = vmatprep.mubr.f32.mxu0 0.0
    %653 = vmatmul.mubr.f32.gmra.mrb[0].mxu0 %v584
    %v654 = vpop.f32.mrb[0].mxu0
    %v655 = vadd.f32 0.0, %v654
    %v656 = vpop.f32.mrb[0].mxu0
    %657 = vdwg.mxu0
    %v658 = vsel %vm165, %v577, -inf
    %659 = vmax.xlane.f32.xlu0 %v658
    %v660 = vpop.xlane.xlu0 %659
    %v661 = vsel %vm165, %v655, -inf
    %662 = vmax.xlane.f32.xlu0 %v661
    %v663 = vpop.xlane.xlu0 %662
    %v664 = vsub.f32 %v577, %v660
    %v665 = vsub.f32 %v655, %v663
    %v666 = vmul.f32 %v664, 1.442695
    %v667 = vpow.pop %v666
    %v668 = vmul.f32 %v665, 1.442695
    %v669 = vpow.pop %v668
    %v670 = vsel %vm165, %v667, 0.0
    %671 = vadd.xlane.f32.xlu0 %v670
    %v672 = vpop.xlane.xlu0 %671
    %v673 = vsel %vm165, %v669, 0.0
    %674 = vadd.xlane.f32.xlu0 %v673
    %v675 = vpop.xlane.xlu0 %674
    %v676 = vrcp.pop %v672
    %v677 = vrcp.pop %v675
    %v678 = vmul.f32 %v672, %v676
    %v679 = vmul.f32 %v675, %v677
    %v680 = vsub.f32 2.0, %v678
    %v681 = vsub.f32 2.0, %v679
    %v682 = vmul.f32 %v676, %v680
    %v683 = vmul.f32 %v677, %v681
    %v684 = vmul.f32 %v667, %v682
    %v685 = vmul.f32 %v669, %v683
    %s686 = scalar_lea.vmem [#allocation9], 8
    %687 = vst.msk [vmem:[%s686] sm:$0xff] %vm165, %v684
    %688 = vst.msk [vmem:[%s686 + $0x20] sm:$0xff] %vm165, %v685
    %689 = vrot.lane.b32.xlu0 %v152, 56
    %v690 = vpop.permute.xlu0 %689
    %v693 = vsel %vm165, %v684, 0
    %695 = vmatprep.subr.mxu0 0.0
    %696 = vmatpush1.msra.mxu0 %v690
    %697 = vmatprep.subr.mxu0 0.0
    %698 = vmatpush1.msra.mxu0 0.0
    %699 = vmatprep.subr.mxu0 0.0
    %700 = vmatpush1.msra.mxu0 0.0
    %701 = vmatprep.subr.mxu0 0.0
    %702 = vmatpush1.msra.mxu0 0.0
    %703 = vmatprep.subr.mxu0 0.0
    %704 = vmatpush1.msra.mxu0 0.0
    %705 = vmatprep.subr.mxu0 0.0
    %706 = vmatpush1.msra.mxu0 0.0
    %707 = vmatprep.subr.mxu0 0.0
    %708 = vmatpush1.msra.mxu0 0.0
    %709 = vmatprep.subr.mxu0 0.0
    %710 = vmatpush1.msra.mxu0 0.0
    %711 = vmatprep.subr.mxu0 0.0
    %712 = vmatpush1.msra.mxu0 0.0
    %713 = vmatprep.subr.mxu0 0.0
    %714 = vmatpush1.msra.mxu0 0.0
    %715 = vmatprep.subr.mxu0 0.0
    %716 = vmatpush1.msra.mxu0 0.0
    %717 = vmatprep.subr.mxu0 0.0
    %718 = vmatpush1.msra.mxu0 0.0
    %719 = vmatprep.subr.mxu0 0.0
    %720 = vmatpush1.msra.mxu0 0.0
    %721 = vmatprep.subr.mxu0 0.0
    %722 = vmatpush1.msra.mxu0 0.0
    %723 = vmatprep.subr.mxu0 0.0
    %724 = vmatpush1.msra.mxu0 0.0
    %725 = vmatprep.subr.mxu0 0.0
    %726 = vmatpush1.msra.mxu0 0.0
    %727 = vmatprep.subr.mxu0 0.0
    %728 = vmatpush1.msra.mxu0 0.0
    %729 = vmatprep.subr.mxu0 0.0
    %730 = vmatpush1.msra.mxu0 0.0
    %731 = vmatprep.subr.mxu0 0.0
    %732 = vmatpush1.msra.mxu0 0.0
    %733 = vmatprep.subr.mxu0 0.0
    %734 = vmatpush1.msra.mxu0 0.0
    %735 = vmatprep.subr.mxu0 0.0
    %736 = vmatpush1.msra.mxu0 0.0
    %737 = vmatprep.subr.mxu0 0.0
    %738 = vmatpush1.msra.mxu0 0.0
    %739 = vmatprep.subr.mxu0 0.0
    %740 = vmatpush1.msra.mxu0 0.0
    %741 = vmatprep.subr.mxu0 0.0
    %742 = vmatpush1.msra.mxu0 0.0
    %743 = vmatprep.subr.mxu0 0.0
    %744 = vmatpush1.msra.mxu0 0.0
    %745 = vmatprep.subr.mxu0 0.0
    %746 = vmatpush1.msra.mxu0 0.0
    %747 = vmatprep.subr.mxu0 0.0
    %748 = vmatpush1.msra.mxu0 0.0
    %749 = vmatprep.subr.mxu0 0.0
    %750 = vmatpush1.msra.mxu0 0.0
    %751 = vmatprep.subr.mxu0 0.0
    %752 = vmatpush1.msra.mxu0 0.0
    %753 = vmatprep.subr.mxu0 0.0
    %754 = vmatpush1.msra.mxu0 0.0
    %755 = vmatprep.subr.mxu0 0.0
    %756 = vmatpush1.msra.mxu0 0.0
    %757 = vmatprep.subr.mxu0 0.0
    %758 = vmatpush1.msra.mxu0 0.0
    %759 = vmatprep.mubr.f32.mxu0 0.0
    %760 = vmatmul.mubr.f32.gmra.mrb[0].mxu0 %v693
    %v761 = vpop.f32.mrb[0].mxu0
    %v762 = vadd.f32 0.0, %v761
    %v763 = vpop.f32.mrb[0].mxu0
    %764 = vdwg.mxu0
    %765 = vrot.lane.b32.xlu0 %v157, 56
    %v766 = vpop.permute.xlu0 %765
    %v769 = vsel %vm165, %v685, 0
    %771 = vmatprep.subr.mxu0 0.0
    %772 = vmatpush1.msra.mxu0 %v766
    %773 = vmatprep.subr.mxu0 0.0
    %774 = vmatpush1.msra.mxu0 0.0
    %775 = vmatprep.subr.mxu0 0.0
    %776 = vmatpush1.msra.mxu0 0.0
    %777 = vmatprep.subr.mxu0 0.0
    %778 = vmatpush1.msra.mxu0 0.0
    %779 = vmatprep.subr.mxu0 0.0
    %780 = vmatpush1.msra.mxu0 0.0
    %781 = vmatprep.subr.mxu0 0.0
    %782 = vmatpush1.msra.mxu0 0.0
    %783 = vmatprep.subr.mxu0 0.0
    %784 = vmatpush1.msra.mxu0 0.0
    %785 = vmatprep.subr.mxu0 0.0
    %786 = vmatpush1.msra.mxu0 0.0
    %787 = vmatprep.subr.mxu0 0.0
    %788 = vmatpush1.msra.mxu0 0.0
    %789 = vmatprep.subr.mxu0 0.0
    %790 = vmatpush1.msra.mxu0 0.0
    %791 = vmatprep.subr.mxu0 0.0
    %792 = vmatpush1.msra.mxu0 0.0
    %793 = vmatprep.subr.mxu0 0.0
    %794 = vmatpush1.msra.mxu0 0.0
    %795 = vmatprep.subr.mxu0 0.0
    %796 = vmatpush1.msra.mxu0 0.0
    %797 = vmatprep.subr.mxu0 0.0
    %798 = vmatpush1.msra.mxu0 0.0
    %799 = vmatprep.subr.mxu0 0.0
    %800 = vmatpush1.msra.mxu0 0.0
    %801 = vmatprep.subr.mxu0 0.0
    %802 = vmatpush1.msra.mxu0 0.0
    %803 = vmatprep.subr.mxu0 0.0
    %804 = vmatpush1.msra.mxu0 0.0
    %805 = vmatprep.subr.mxu0 0.0
    %806 = vmatpush1.msra.mxu0 0.0
    %807 = vmatprep.subr.mxu0 0.0
    %808 = vmatpush1.msra.mxu0 0.0
    %809 = vmatprep.subr.mxu0 0.0
    %810 = vmatpush1.msra.mxu0 0.0
    %811 = vmatprep.subr.mxu0 0.0
    %812 = vmatpush1.msra.mxu0 0.0
    %813 = vmatprep.subr.mxu0 0.0
    %814 = vmatpush1.msra.mxu0 0.0
    %815 = vmatprep.subr.mxu0 0.0
    %816 = vmatpush1.msra.mxu0 0.0
    %817 = vmatprep.subr.mxu0 0.0
    %818 = vmatpush1.msra.mxu0 0.0
    %819 = vmatprep.subr.mxu0 0.0
    %820 = vmatpush1.msra.mxu0 0.0
    %821 = vmatprep.subr.mxu0 0.0
    %822 = vmatpush1.msra.mxu0 0.0
    %823 = vmatprep.subr.mxu0 0.0
    %824 = vmatpush1.msra.mxu0 0.0
    %825 = vmatprep.subr.mxu0 0.0
    %826 = vmatpush1.msra.mxu0 0.0
    %827 = vmatprep.subr.mxu0 0.0
    %828 = vmatpush1.msra.mxu0 0.0
    %829 = vmatprep.subr.mxu0 0.0
    %830 = vmatpush1.msra.mxu0 0.0
    %831 = vmatprep.subr.mxu0 0.0
    %832 = vmatpush1.msra.mxu0 0.0
    %833 = vmatprep.subr.mxu0 0.0
    %834 = vmatpush1.msra.mxu0 0.0
    %835 = vmatprep.mubr.f32.mxu0 0.0
    %836 = vmatmul.mubr.f32.gmra.mrb[0].mxu0 %v769
    %v837 = vpop.f32.mrb[0].mxu0
    %v838 = vadd.f32 0.0, %v837
    %v839 = vpop.f32.mrb[0].mxu0
    %840 = vdwg.mxu0
    %v841 = vld [vmem:[#allocation7 + $0x8] sm:$0xff]
    %v843 = vsel %vm165, %v762, 0
    %v846 = vsel %vm165, %v838, 0
    %848 = vmatprep.subr.mxu0 0.0
    %849 = vmatpush1.msra.mxu0 %v841
    %850 = vmatprep.subr.mxu0 0.0
    %851 = vmatpush1.msra.mxu0 0.0
    %852 = vmatprep.subr.mxu0 0.0
    %853 = vmatpush1.msra.mxu0 0.0
    %854 = vmatprep.subr.mxu0 0.0
    %855 = vmatpush1.msra.mxu0 0.0
    %856 = vmatprep.subr.mxu0 0.0
    %857 = vmatpush1.msra.mxu0 0.0
    %858 = vmatprep.subr.mxu0 0.0
    %859 = vmatpush1.msra.mxu0 0.0
    %860 = vmatprep.subr.mxu0 0.0
    %861 = vmatpush1.msra.mxu0 0.0
    %862 = vmatprep.subr.mxu0 0.0
    %863 = vmatpush1.msra.mxu0 0.0
    %864 = vmatprep.subr.mxu0 0.0
    %865 = vmatpush1.msra.mxu0 0.0
    %866 = vmatprep.subr.mxu0 0.0
    %867 = vmatpush1.msra.mxu0 0.0
    %868 = vmatprep.subr.mxu0 0.0
    %869 = vmatpush1.msra.mxu0 0.0
    %870 = vmatprep.subr.mxu0 0.0
    %871 = vmatpush1.msra.mxu0 0.0
    %872 = vmatprep.subr.mxu0 0.0
    %873 = vmatpush1.msra.mxu0 0.0
    %874 = vmatprep.subr.mxu0 0.0
    %875 = vmatpush1.msra.mxu0 0.0
    %876 = vmatprep.subr.mxu0 0.0
    %877 = vmatpush1.msra.mxu0 0.0
    %878 = vmatprep.subr.mxu0 0.0
    %879 = vmatpush1.msra.mxu0 0.0
    %880 = vmatprep.subr.mxu0 0.0
    %881 = vmatpush1.msra.mxu0 0.0
    %882 = vmatprep.subr.mxu0 0.0
    %883 = vmatpush1.msra.mxu0 0.0
    %884 = vmatprep.subr.mxu0 0.0
    %885 = vmatpush1.msra.mxu0 0.0
    %886 = vmatprep.subr.mxu0 0.0
    %887 = vmatpush1.msra.mxu0 0.0
    %888 = vmatprep.subr.mxu0 0.0
    %889 = vmatpush1.msra.mxu0 0.0
    %890 = vmatprep.subr.mxu0 0.0
    %891 = vmatpush1.msra.mxu0 0.0
    %892 = vmatprep.subr.mxu0 0.0
    %893 = vmatpush1.msra.mxu0 0.0
    %894 = vmatprep.subr.mxu0 0.0
    %895 = vmatpush1.msra.mxu0 0.0
    %896 = vmatprep.subr.mxu0 0.0
    %897 = vmatpush1.msra.mxu0 0.0
    %898 = vmatprep.subr.mxu0 0.0
    %899 = vmatpush1.msra.mxu0 0.0
    %900 = vmatprep.subr.mxu0 0.0
    %901 = vmatpush1.msra.mxu0 0.0
    %902 = vmatprep.subr.mxu0 0.0
    %903 = vmatpush1.msra.mxu0 0.0
    %904 = vmatprep.subr.mxu0 0.0
    %905 = vmatpush1.msra.mxu0 0.0
    %906 = vmatprep.subr.mxu0 0.0
    %907 = vmatpush1.msra.mxu0 0.0
    %908 = vmatprep.subr.mxu0 0.0
    %909 = vmatpush1.msra.mxu0 0.0
    %910 = vmatprep.subr.mxu0 0.0
    %911 = vmatpush1.msra.mxu0 0.0
    %912 = vmatprep.mubr.f32.mxu0 0.0
    %913 = vmatmul.mubr.f32.gmra.mrb[0].mxu0 %v843
    %v914 = vpop.f32.mrb[0].mxu0
    %v915 = vadd.f32 0.0, %v914
    %v916 = vpop.f32.mrb[0].mxu0
    %917 = vmatprep.mubr.f32.mxu0 0.0
    %918 = vmatmul.mubr.f32.gmra.mrb[0].mxu0 %v846
    %v919 = vpop.f32.mrb[0].mxu0
    %v920 = vadd.f32 0.0, %v919
    %v921 = vpop.f32.mrb[0].mxu0
    %922 = vdwg.mxu0
    %v924 = vsel %vm165, %v422, 0
    %v927 = vsel %vm165, %v498, 0
    %929 = vmatprep.subr.mxu0 0.0
    %930 = vmatpush1.msra.mxu0 %v501
    %931 = vmatprep.subr.mxu0 0.0
    %932 = vmatpush1.msra.mxu0 0.0
    %933 = vmatprep.subr.mxu0 0.0
    %934 = vmatpush1.msra.mxu0 0.0
    %935 = vmatprep.subr.mxu0 0.0
    %936 = vmatpush1.msra.mxu0 0.0
    %937 = vmatprep.subr.mxu0 0.0
    %938 = vmatpush1.msra.mxu0 0.0
    %939 = vmatprep.subr.mxu0 0.0
    %940 = vmatpush1.msra.mxu0 0.0
    %941 = vmatprep.subr.mxu0 0.0
    %942 = vmatpush1.msra.mxu0 0.0
    %943 = vmatprep.subr.mxu0 0.0
    %944 = vmatpush1.msra.mxu0 0.0
    %945 = vmatprep.subr.mxu0 0.0
    %946 = vmatpush1.msra.mxu0 0.0
    %947 = vmatprep.subr.mxu0 0.0
    %948 = vmatpush1.msra.mxu0 0.0
    %949 = vmatprep.subr.mxu0 0.0
    %950 = vmatpush1.msra.mxu0 0.0
    %951 = vmatprep.subr.mxu0 0.0
    %952 = vmatpush1.msra.mxu0 0.0
    %953 = vmatprep.subr.mxu0 0.0
    %954 = vmatpush1.msra.mxu0 0.0
    %955 = vmatprep.subr.mxu0 0.0
    %956 = vmatpush1.msra.mxu0 0.0
    %957 = vmatprep.subr.mxu0 0.0
    %958 = vmatpush1.msra.mxu0 0.0
    %959 = vmatprep.subr.mxu0 0.0
    %960 = vmatpush1.msra.mxu0 0.0
    %961 = vmatprep.subr.mxu0 0.0
    %962 = vmatpush1.msra.mxu0 0.0
    %963 = vmatprep.subr.mxu0 0.0
    %964 = vmatpush1.msra.mxu0 0.0
    %965 = vmatprep.subr.mxu0 0.0
    %966 = vmatpush1.msra.mxu0 0.0
    %967 = vmatprep.subr.mxu0 0.0
    %968 = vmatpush1.msra.mxu0 0.0
    %969 = vmatprep.subr.mxu0 0.0
    %970 = vmatpush1.msra.mxu0 0.0
    %971 = vmatprep.subr.mxu0 0.0
    %972 = vmatpush1.msra.mxu0 0.0
    %973 = vmatprep.subr.mxu0 0.0
    %974 = vmatpush1.msra.mxu0 0.0
    %975 = vmatprep.subr.mxu0 0.0
    %976 = vmatpush1.msra.mxu0 0.0
    %977 = vmatprep.subr.mxu0 0.0
    %978 = vmatpush1.msra.mxu0 0.0
    %979 = vmatprep.subr.mxu0 0.0
    %980 = vmatpush1.msra.mxu0 0.0
    %981 = vmatprep.subr.mxu0 0.0
    %982 = vmatpush1.msra.mxu0 0.0
    %983 = vmatprep.subr.mxu0 0.0
    %984 = vmatpush1.msra.mxu0 0.0
    %985 = vmatprep.subr.mxu0 0.0
    %986 = vmatpush1.msra.mxu0 0.0
    %987 = vmatprep.subr.mxu0 0.0
    %988 = vmatpush1.msra.mxu0 0.0
    %989 = vmatprep.subr.mxu0 0.0
    %990 = vmatpush1.msra.mxu0 0.0
    %991 = vmatprep.subr.mxu0 0.0
    %992 = vmatpush1.msra.mxu0 0.0
    %993 = vmatprep.mubr.f32.mxu0 0.0
    %994 = vmatmul.mubr.f32.gmra.mrb[0].mxu0 %v924
    %v995 = vpop.f32.mrb[0].mxu0
    %v996 = vadd.f32 %v915, %v995
    %v997 = vpop.f32.mrb[0].mxu0
    %998 = vmatprep.mubr.f32.mxu0 0.0
    %999 = vmatmul.mubr.f32.gmra.mrb[0].mxu0 %v927
    %v1000 = vpop.f32.mrb[0].mxu0
    %v1001 = vadd.f32 %v920, %v1000
    %v1002 = vpop.f32.mrb[0].mxu0
    %1003 = vdwg.mxu0
    %1004 = vrot.lane.b32.xlu0 %v160, 112
    %v1005 = vpop.permute.xlu0 %1004
    %1006 = vrot.lane.b32.xlu0 %v152, 80
    %v1007 = vpop.permute.xlu0 %1006
    %v1008 = vsel %vm165, %v1005, 0
    %v1010 = vsel %vm165, %v1007, 0
    %1012 = vmatprep.subr.mxu0 0.0
    %1013 = vmatpush1.xpose.msra.mxu0 %v1010
    %1014 = vmatprep.subr.mxu0 0.0
    %1015 = vmatpush1.xpose.msra.mxu0 0.0
    %1016 = vmatprep.subr.mxu0 0.0
    %1017 = vmatpush1.xpose.msra.mxu0 0.0
    %1018 = vmatprep.subr.mxu0 0.0
    %1019 = vmatpush1.xpose.msra.mxu0 0.0
    %1020 = vmatprep.subr.mxu0 0.0
    %1021 = vmatpush1.xpose.msra.mxu0 0.0
    %1022 = vmatprep.subr.mxu0 0.0
    %1023 = vmatpush1.xpose.msra.mxu0 0.0
    %1024 = vmatprep.subr.mxu0 0.0
    %1025 = vmatpush1.xpose.msra.mxu0 0.0
    %1026 = vmatprep.subr.mxu0 0.0
    %1027 = vmatpush1.xpose.msra.mxu0 0.0
    %1028 = vmatprep.subr.mxu0 0.0
    %1029 = vmatpush1.xpose.msra.mxu0 0.0
    %1030 = vmatprep.subr.mxu0 0.0
    %1031 = vmatpush1.xpose.msra.mxu0 0.0
    %1032 = vmatprep.subr.mxu0 0.0
    %1033 = vmatpush1.xpose.msra.mxu0 0.0
    %1034 = vmatprep.subr.mxu0 0.0
    %1035 = vmatpush1.xpose.msra.mxu0 0.0
    %1036 = vmatprep.subr.mxu0 0.0
    %1037 = vmatpush1.xpose.msra.mxu0 0.0
    %1038 = vmatprep.subr.mxu0 0.0
    %1039 = vmatpush1.xpose.msra.mxu0 0.0
    %1040 = vmatprep.subr.mxu0 0.0
    %1041 = vmatpush1.xpose.msra.mxu0 0.0
    %1042 = vmatprep.subr.mxu0 0.0
    %1043 = vmatpush1.xpose.msra.mxu0 0.0
    %1044 = vmatprep.subr.mxu0 0.0
    %1045 = vmatpush1.xpose.msra.mxu0 0.0
    %1046 = vmatprep.subr.mxu0 0.0
    %1047 = vmatpush1.xpose.msra.mxu0 0.0
    %1048 = vmatprep.subr.mxu0 0.0
    %1049 = vmatpush1.xpose.msra.mxu0 0.0
    %1050 = vmatprep.subr.mxu0 0.0
    %1051 = vmatpush1.xpose.msra.mxu0 0.0
    %1052 = vmatprep.subr.mxu0 0.0
    %1053 = vmatpush1.xpose.msra.mxu0 0.0
    %1054 = vmatprep.subr.mxu0 0.0
    %1055 = vmatpush1.xpose.msra.mxu0 0.0
    %1056 = vmatprep.subr.mxu0 0.0
    %1057 = vmatpush1.xpose.msra.mxu0 0.0
    %1058 = vmatprep.subr.mxu0 0.0
    %1059 = vmatpush1.xpose.msra.mxu0 0.0
    %1060 = vmatprep.subr.mxu0 0.0
    %1061 = vmatpush1.xpose.msra.mxu0 0.0
    %1062 = vmatprep.subr.mxu0 0.0
    %1063 = vmatpush1.xpose.msra.mxu0 0.0
    %1064 = vmatprep.subr.mxu0 0.0
    %1065 = vmatpush1.xpose.msra.mxu0 0.0
    %1066 = vmatprep.subr.mxu0 0.0
    %1067 = vmatpush1.xpose.msra.mxu0 0.0
    %1068 = vmatprep.subr.mxu0 0.0
    %1069 = vmatpush1.xpose.msra.mxu0 0.0
    %1070 = vmatprep.subr.mxu0 0.0
    %1071 = vmatpush1.xpose.msra.mxu0 0.0
    %1072 = vmatprep.subr.mxu0 0.0
    %1073 = vmatpush1.xpose.msra.mxu0 0.0
    %1074 = vmatprep.subr.mxu0 0.0
    %1075 = vmatpush1.xpose.msra.mxu0 0.0
    %1076 = vmatprep.mubr.f32.mxu0 0.0
    %1077 = vmatmul.mubr.f32.gmra.mrb[0].mxu0 %v1008
    %v1078 = vpop.f32.mrb[0].mxu0
    %v1079 = vadd.f32 0.0, %v1078
    %v1080 = vpop.f32.mrb[0].mxu0
    %1081 = vdwg.mxu0
    %1082 = vrot.lane.b32.xlu0 %v161, 112
    %v1083 = vpop.permute.xlu0 %1082
    %1084 = vrot.lane.b32.xlu0 %v157, 80
    %v1085 = vpop.permute.xlu0 %1084
    %v1086 = vsel %vm165, %v1083, 0
    %v1088 = vsel %vm165, %v1085, 0
    %1090 = vmatprep.subr.mxu0 0.0
    %1091 = vmatpush1.xpose.msra.mxu0 %v1088
    %1092 = vmatprep.subr.mxu0 0.0
    %1093 = vmatpush1.xpose.msra.mxu0 0.0
    %1094 = vmatprep.subr.mxu0 0.0
    %1095 = vmatpush1.xpose.msra.mxu0 0.0
    %1096 = vmatprep.subr.mxu0 0.0
    %1097 = vmatpush1.xpose.msra.mxu0 0.0
    %1098 = vmatprep.subr.mxu0 0.0
    %1099 = vmatpush1.xpose.msra.mxu0 0.0
    %1100 = vmatprep.subr.mxu0 0.0
    %1101 = vmatpush1.xpose.msra.mxu0 0.0
    %1102 = vmatprep.subr.mxu0 0.0
    %1103 = vmatpush1.xpose.msra.mxu0 0.0
    %1104 = vmatprep.subr.mxu0 0.0
    %1105 = vmatpush1.xpose.msra.mxu0 0.0
    %1106 = vmatprep.subr.mxu0 0.0
    %1107 = vmatpush1.xpose.msra.mxu0 0.0
    %1108 = vmatprep.subr.mxu0 0.0
    %1109 = vmatpush1.xpose.msra.mxu0 0.0
    %1110 = vmatprep.subr.mxu0 0.0
    %1111 = vmatpush1.xpose.msra.mxu0 0.0
    %1112 = vmatprep.subr.mxu0 0.0
    %1113 = vmatpush1.xpose.msra.mxu0 0.0
    %1114 = vmatprep.subr.mxu0 0.0
    %1115 = vmatpush1.xpose.msra.mxu0 0.0
    %1116 = vmatprep.subr.mxu0 0.0
    %1117 = vmatpush1.xpose.msra.mxu0 0.0
    %1118 = vmatprep.subr.mxu0 0.0
    %1119 = vmatpush1.xpose.msra.mxu0 0.0
    %1120 = vmatprep.subr.mxu0 0.0
    %1121 = vmatpush1.xpose.msra.mxu0 0.0
    %1122 = vmatprep.subr.mxu0 0.0
    %1123 = vmatpush1.xpose.msra.mxu0 0.0
    %1124 = vmatprep.subr.mxu0 0.0
    %1125 = vmatpush1.xpose.msra.mxu0 0.0
    %1126 = vmatprep.subr.mxu0 0.0
    %1127 = vmatpush1.xpose.msra.mxu0 0.0
    %1128 = vmatprep.subr.mxu0 0.0
    %1129 = vmatpush1.xpose.msra.mxu0 0.0
    %1130 = vmatprep.subr.mxu0 0.0
    %1131 = vmatpush1.xpose.msra.mxu0 0.0
    %1132 = vmatprep.subr.mxu0 0.0
    %1133 = vmatpush1.xpose.msra.mxu0 0.0
    %1134 = vmatprep.subr.mxu0 0.0
    %1135 = vmatpush1.xpose.msra.mxu0 0.0
    %1136 = vmatprep.subr.mxu0 0.0
    %1137 = vmatpush1.xpose.msra.mxu0 0.0
    %1138 = vmatprep.subr.mxu0 0.0
    %1139 = vmatpush1.xpose.msra.mxu0 0.0
    %1140 = vmatprep.subr.mxu0 0.0
    %1141 = vmatpush1.xpose.msra.mxu0 0.0
    %1142 = vmatprep.subr.mxu0 0.0
    %1143 = vmatpush1.xpose.msra.mxu0 0.0
    %1144 = vmatprep.subr.mxu0 0.0
    %1145 = vmatpush1.xpose.msra.mxu0 0.0
    %1146 = vmatprep.subr.mxu0 0.0
    %1147 = vmatpush1.xpose.msra.mxu0 0.0
    %1148 = vmatprep.subr.mxu0 0.0
    %1149 = vmatpush1.xpose.msra.mxu0 0.0
    %1150 = vmatprep.subr.mxu0 0.0
    %1151 = vmatpush1.xpose.msra.mxu0 0.0
    %1152 = vmatprep.subr.mxu0 0.0
    %1153 = vmatpush1.xpose.msra.mxu0 0.0
    %1154 = vmatprep.mubr.f32.mxu0 0.0
    %1155 = vmatmul.mubr.f32.gmra.mrb[0].mxu0 %v1086
    %v1156 = vpop.f32.mrb[0].mxu0
    %v1157 = vadd.f32 0.0, %v1156
    %v1158 = vpop.f32.mrb[0].mxu0
    %1159 = vdwg.mxu0
    %v1160 = vsel %vm165, %v1079, -inf
    %1161 = vmax.xlane.f32.xlu0 %v1160
    %v1162 = vpop.xlane.xlu0 %1161
    %v1163 = vsel %vm165, %v1157, -inf
    %1164 = vmax.xlane.f32.xlu0 %v1163
    %v1165 = vpop.xlane.xlu0 %1164
    %v1166 = vsub.f32 %v1079, %v1162
    %v1167 = vsub.f32 %v1157, %v1165
    %v1168 = vmul.f32 %v1166, 1.442695
    %v1169 = vpow.pop %v1168
    %v1170 = vmul.f32 %v1167, 1.442695
    %v1171 = vpow.pop %v1170
    %v1172 = vsel %vm165, %v1169, 0.0
    %1173 = vadd.xlane.f32.xlu0 %v1172
    %v1174 = vpop.xlane.xlu0 %1173
    %v1175 = vsel %vm165, %v1171, 0.0
    %1176 = vadd.xlane.f32.xlu0 %v1175
    %v1177 = vpop.xlane.xlu0 %1176
    %v1178 = vrcp.pop %v1174
    %v1179 = vrcp.pop %v1177
    %v1180 = vmul.f32 %v1174, %v1178
    %v1181 = vmul.f32 %v1177, %v1179
    %v1182 = vsub.f32 2.0, %v1180
    %v1183 = vsub.f32 2.0, %v1181
    %v1184 = vmul.f32 %v1178, %v1182
    %v1185 = vmul.f32 %v1179, %v1183
    %v1186 = vmul.f32 %v1169, %v1184
    %v1187 = vmul.f32 %v1171, %v1185
    %s1188 = scalar_lea.vmem [#allocation9], 16
    %1189 = vst.msk [vmem:[%s1188] sm:$0xff] %vm165, %v1186
    %1190 = vst.msk [vmem:[%s1188 + $0x20] sm:$0xff] %vm165, %v1187
    %1191 = vrot.lane.b32.xlu0 %v152, 48
    %v1192 = vpop.permute.xlu0 %1191
    %v1195 = vsel %vm165, %v1186, 0
    %1197 = vmatprep.subr.mxu0 0.0
    %1198 = vmatpush1.msra.mxu0 %v1192
    %1199 = vmatprep.subr.mxu0 0.0
    %1200 = vmatpush1.msra.mxu0 0.0
    %1201 = vmatprep.subr.mxu0 0.0
    %1202 = vmatpush1.msra.mxu0 0.0
    %1203 = vmatprep.subr.mxu0 0.0
    %1204 = vmatpush1.msra.mxu0 0.0
    %1205 = vmatprep.subr.mxu0 0.0
    %1206 = vmatpush1.msra.mxu0 0.0
    %1207 = vmatprep.subr.mxu0 0.0
    %1208 = vmatpush1.msra.mxu0 0.0
    %1209 = vmatprep.subr.mxu0 0.0
    %1210 = vmatpush1.msra.mxu0 0.0
    %1211 = vmatprep.subr.mxu0 0.0
    %1212 = vmatpush1.msra.mxu0 0.0
    %1213 = vmatprep.subr.mxu0 0.0
    %1214 = vmatpush1.msra.mxu0 0.0
    %1215 = vmatprep.subr.mxu0 0.0
    %1216 = vmatpush1.msra.mxu0 0.0
    %1217 = vmatprep.subr.mxu0 0.0
    %1218 = vmatpush1.msra.mxu0 0.0
    %1219 = vmatprep.subr.mxu0 0.0
    %1220 = vmatpush1.msra.mxu0 0.0
    %1221 = vmatprep.subr.mxu0 0.0
    %1222 = vmatpush1.msra.mxu0 0.0
    %1223 = vmatprep.subr.mxu0 0.0
    %1224 = vmatpush1.msra.mxu0 0.0
    %1225 = vmatprep.subr.mxu0 0.0
    %1226 = vmatpush1.msra.mxu0 0.0
    %1227 = vmatprep.subr.mxu0 0.0
    %1228 = vmatpush1.msra.mxu0 0.0
    %1229 = vmatprep.subr.mxu0 0.0
    %1230 = vmatpush1.msra.mxu0 0.0
    %1231 = vmatprep.subr.mxu0 0.0
    %1232 = vmatpush1.msra.mxu0 0.0
    %1233 = vmatprep.subr.mxu0 0.0
    %1234 = vmatpush1.msra.mxu0 0.0
    %1235 = vmatprep.subr.mxu0 0.0
    %1236 = vmatpush1.msra.mxu0 0.0
    %1237 = vmatprep.subr.mxu0 0.0
    %1238 = vmatpush1.msra.mxu0 0.0
    %1239 = vmatprep.subr.mxu0 0.0
    %1240 = vmatpush1.msra.mxu0 0.0
    %1241 = vmatprep.subr.mxu0 0.0
    %1242 = vmatpush1.msra.mxu0 0.0
    %1243 = vmatprep.subr.mxu0 0.0
    %1244 = vmatpush1.msra.mxu0 0.0
    %1245 = vmatprep.subr.mxu0 0.0
    %1246 = vmatpush1.msra.mxu0 0.0
    %1247 = vmatprep.subr.mxu0 0.0
    %1248 = vmatpush1.msra.mxu0 0.0
    %1249 = vmatprep.subr.mxu0 0.0
    %1250 = vmatpush1.msra.mxu0 0.0
    %1251 = vmatprep.subr.mxu0 0.0
    %1252 = vmatpush1.msra.mxu0 0.0
    %1253 = vmatprep.subr.mxu0 0.0
    %1254 = vmatpush1.msra.mxu0 0.0
    %1255 = vmatprep.subr.mxu0 0.0
    %1256 = vmatpush1.msra.mxu0 0.0
    %1257 = vmatprep.subr.mxu0 0.0
    %1258 = vmatpush1.msra.mxu0 0.0
    %1259 = vmatprep.subr.mxu0 0.0
    %1260 = vmatpush1.msra.mxu0 0.0
    %1261 = vmatprep.mubr.f32.mxu0 0.0
    %1262 = vmatmul.mubr.f32.gmra.mrb[0].mxu0 %v1195
    %v1263 = vpop.f32.mrb[0].mxu0
    %v1264 = vadd.f32 0.0, %v1263
    %v1265 = vpop.f32.mrb[0].mxu0
    %1266 = vdwg.mxu0
    %1267 = vrot.lane.b32.xlu0 %v157, 48
    %v1268 = vpop.permute.xlu0 %1267
    %v1271 = vsel %vm165, %v1187, 0
    %1273 = vmatprep.subr.mxu0 0.0
    %1274 = vmatpush1.msra.mxu0 %v1268
    %1275 = vmatprep.subr.mxu0 0.0
    %1276 = vmatpush1.msra.mxu0 0.0
    %1277 = vmatprep.subr.mxu0 0.0
    %1278 = vmatpush1.msra.mxu0 0.0
    %1279 = vmatprep.subr.mxu0 0.0
    %1280 = vmatpush1.msra.mxu0 0.0
    %1281 = vmatprep.subr.mxu0 0.0
    %1282 = vmatpush1.msra.mxu0 0.0
    %1283 = vmatprep.subr.mxu0 0.0
    %1284 = vmatpush1.msra.mxu0 0.0
    %1285 = vmatprep.subr.mxu0 0.0
    %1286 = vmatpush1.msra.mxu0 0.0
    %1287 = vmatprep.subr.mxu0 0.0
    %1288 = vmatpush1.msra.mxu0 0.0
    %1289 = vmatprep.subr.mxu0 0.0
    %1290 = vmatpush1.msra.mxu0 0.0
    %1291 = vmatprep.subr.mxu0 0.0
    %1292 = vmatpush1.msra.mxu0 0.0
    %1293 = vmatprep.subr.mxu0 0.0
    %1294 = vmatpush1.msra.mxu0 0.0
    %1295 = vmatprep.subr.mxu0 0.0
    %1296 = vmatpush1.msra.mxu0 0.0
    %1297 = vmatprep.subr.mxu0 0.0
    %1298 = vmatpush1.msra.mxu0 0.0
    %1299 = vmatprep.subr.mxu0 0.0
    %1300 = vmatpush1.msra.mxu0 0.0
    %1301 = vmatprep.subr.mxu0 0.0
    %1302 = vmatpush1.msra.mxu0 0.0
    %1303 = vmatprep.subr.mxu0 0.0
    %1304 = vmatpush1.msra.mxu0 0.0
    %1305 = vmatprep.subr.mxu0 0.0
    %1306 = vmatpush1.msra.mxu0 0.0
    %1307 = vmatprep.subr.mxu0 0.0
    %1308 = vmatpush1.msra.mxu0 0.0
    %1309 = vmatprep.subr.mxu0 0.0
    %1310 = vmatpush1.msra.mxu0 0.0
    %1311 = vmatprep.subr.mxu0 0.0
    %1312 = vmatpush1.msra.mxu0 0.0
    %1313 = vmatprep.subr.mxu0 0.0
    %1314 = vmatpush1.msra.mxu0 0.0
    %1315 = vmatprep.subr.mxu0 0.0
    %1316 = vmatpush1.msra.mxu0 0.0
    %1317 = vmatprep.subr.mxu0 0.0
    %1318 = vmatpush1.msra.mxu0 0.0
    %1319 = vmatprep.subr.mxu0 0.0
    %1320 = vmatpush1.msra.mxu0 0.0
    %1321 = vmatprep.subr.mxu0 0.0
    %1322 = vmatpush1.msra.mxu0 0.0
    %1323 = vmatprep.subr.mxu0 0.0
    %1324 = vmatpush1.msra.mxu0 0.0
    %1325 = vmatprep.subr.mxu0 0.0
    %1326 = vmatpush1.msra.mxu0 0.0
    %1327 = vmatprep.subr.mxu0 0.0
    %1328 = vmatpush1.msra.mxu0 0.0
    %1329 = vmatprep.subr.mxu0 0.0
    %1330 = vmatpush1.msra.mxu0 0.0
    %1331 = vmatprep.subr.mxu0 0.0
    %1332 = vmatpush1.msra.mxu0 0.0
    %1333 = vmatprep.subr.mxu0 0.0
    %1334 = vmatpush1.msra.mxu0 0.0
    %1335 = vmatprep.subr.mxu0 0.0
    %1336 = vmatpush1.msra.mxu0 0.0
    %1337 = vmatprep.mubr.f32.mxu0 0.0
    %1338 = vmatmul.mubr.f32.gmra.mrb[0].mxu0 %v1271
    %v1339 = vpop.f32.mrb[0].mxu0
    %v1340 = vadd.f32 0.0, %v1339
    %v1341 = vpop.f32.mrb[0].mxu0
    %1342 = vdwg.mxu0
    %v1343 = vld [vmem:[#allocation7 + $0x10] sm:$0xff]
    %v1345 = vsel %vm165, %v1264, 0
    %v1348 = vsel %vm165, %v1340, 0
    %1350 = vmatprep.subr.mxu0 0.0
    %1351 = vmatpush1.msra.mxu0 %v1343
    %1352 = vmatprep.subr.mxu0 0.0
    %1353 = vmatpush1.msra.mxu0 0.0
    %1354 = vmatprep.subr.mxu0 0.0
    %1355 = vmatpush1.msra.mxu0 0.0
    %1356 = vmatprep.subr.mxu0 0.0
    %1357 = vmatpush1.msra.mxu0 0.0
    %1358 = vmatprep.subr.mxu0 0.0
    %1359 = vmatpush1.msra.mxu0 0.0
    %1360 = vmatprep.subr.mxu0 0.0
    %1361 = vmatpush1.msra.mxu0 0.0
    %1362 = vmatprep.subr.mxu0 0.0
    %1363 = vmatpush1.msra.mxu0 0.0
    %1364 = vmatprep.subr.mxu0 0.0
    %1365 = vmatpush1.msra.mxu0 0.0
    %1366 = vmatprep.subr.mxu0 0.0
    %1367 = vmatpush1.msra.mxu0 0.0
    %1368 = vmatprep.subr.mxu0 0.0
    %1369 = vmatpush1.msra.mxu0 0.0
    %1370 = vmatprep.subr.mxu0 0.0
    %1371 = vmatpush1.msra.mxu0 0.0
    %1372 = vmatprep.subr.mxu0 0.0
    %1373 = vmatpush1.msra.mxu0 0.0
    %1374 = vmatprep.subr.mxu0 0.0
    %1375 = vmatpush1.msra.mxu0 0.0
    %1376 = vmatprep.subr.mxu0 0.0
    %1377 = vmatpush1.msra.mxu0 0.0
    %1378 = vmatprep.subr.mxu0 0.0
    %1379 = vmatpush1.msra.mxu0 0.0
    %1380 = vmatprep.subr.mxu0 0.0
    %1381 = vmatpush1.msra.mxu0 0.0
    %1382 = vmatprep.subr.mxu0 0.0
    %1383 = vmatpush1.msra.mxu0 0.0
    %1384 = vmatprep.subr.mxu0 0.0
    %1385 = vmatpush1.msra.mxu0 0.0
    %1386 = vmatprep.subr.mxu0 0.0
    %1387 = vmatpush1.msra.mxu0 0.0
    %1388 = vmatprep.subr.mxu0 0.0
    %1389 = vmatpush1.msra.mxu0 0.0
    %1390 = vmatprep.subr.mxu0 0.0
    %1391 = vmatpush1.msra.mxu0 0.0
    %1392 = vmatprep.subr.mxu0 0.0
    %1393 = vmatpush1.msra.mxu0 0.0
    %1394 = vmatprep.subr.mxu0 0.0
    %1395 = vmatpush1.msra.mxu0 0.0
    %1396 = vmatprep.subr.mxu0 0.0
    %1397 = vmatpush1.msra.mxu0 0.0
    %1398 = vmatprep.subr.mxu0 0.0
    %1399 = vmatpush1.msra.mxu0 0.0
    %1400 = vmatprep.subr.mxu0 0.0
    %1401 = vmatpush1.msra.mxu0 0.0
    %1402 = vmatprep.subr.mxu0 0.0
    %1403 = vmatpush1.msra.mxu0 0.0
    %1404 = vmatprep.subr.mxu0 0.0
    %1405 = vmatpush1.msra.mxu0 0.0
    %1406 = vmatprep.subr.mxu0 0.0
    %1407 = vmatpush1.msra.mxu0 0.0
    %1408 = vmatprep.subr.mxu0 0.0
    %1409 = vmatpush1.msra.mxu0 0.0
    %1410 = vmatprep.subr.mxu0 0.0
    %1411 = vmatpush1.msra.mxu0 0.0
    %1412 = vmatprep.subr.mxu0 0.0
    %1413 = vmatpush1.msra.mxu0 0.0
    %1414 = vmatprep.mubr.f32.mxu0 0.0
    %1415 = vmatmul.mubr.f32.gmra.mrb[0].mxu0 %v1345
    %v1416 = vpop.f32.mrb[0].mxu0
    %v1417 = vadd.f32 0.0, %v1416
    %v1418 = vpop.f32.mrb[0].mxu0
    %1419 = vmatprep.mubr.f32.mxu0 0.0
    %1420 = vmatmul.mubr.f32.gmra.mrb[0].mxu0 %v1348
    %v1421 = vpop.f32.mrb[0].mxu0
    %v1422 = vadd.f32 0.0, %v1421
    %v1423 = vpop.f32.mrb[0].mxu0
    %1424 = vdwg.mxu0
    %v1425 = vadd.f32 %v996, %v1417
    %v1426 = vadd.f32 %v1001, %v1422
    %1427 = vrot.lane.b32.xlu0 %v160, 104
    %v1428 = vpop.permute.xlu0 %1427
    %1429 = vrot.lane.b32.xlu0 %v152, 72
    %v1430 = vpop.permute.xlu0 %1429
    %v1431 = vsel %vm165, %v1428, 0
    %v1433 = vsel %vm165, %v1430, 0
    %1435 = vmatprep.subr.mxu0 0.0
    %1436 = vmatpush1.xpose.msra.mxu0 %v1433
    %1437 = vmatprep.subr.mxu0 0.0
    %1438 = vmatpush1.xpose.msra.mxu0 0.0
    %1439 = vmatprep.subr.mxu0 0.0
    %1440 = vmatpush1.xpose.msra.mxu0 0.0
    %1441 = vmatprep.subr.mxu0 0.0
    %1442 = vmatpush1.xpose.msra.mxu0 0.0
    %1443 = vmatprep.subr.mxu0 0.0
    %1444 = vmatpush1.xpose.msra.mxu0 0.0
    %1445 = vmatprep.subr.mxu0 0.0
    %1446 = vmatpush1.xpose.msra.mxu0 0.0
    %1447 = vmatprep.subr.mxu0 0.0
    %1448 = vmatpush1.xpose.msra.mxu0 0.0
    %1449 = vmatprep.subr.mxu0 0.0
    %1450 = vmatpush1.xpose.msra.mxu0 0.0
    %1451 = vmatprep.subr.mxu0 0.0
    %1452 = vmatpush1.xpose.msra.mxu0 0.0
    %1453 = vmatprep.subr.mxu0 0.0
    %1454 = vmatpush1.xpose.msra.mxu0 0.0
    %1455 = vmatprep.subr.mxu0 0.0
    %1456 = vmatpush1.xpose.msra.mxu0 0.0
    %1457 = vmatprep.subr.mxu0 0.0
    %1458 = vmatpush1.xpose.msra.mxu0 0.0
    %1459 = vmatprep.subr.mxu0 0.0
    %1460 = vmatpush1.xpose.msra.mxu0 0.0
    %1461 = vmatprep.subr.mxu0 0.0
    %1462 = vmatpush1.xpose.msra.mxu0 0.0
    %1463 = vmatprep.subr.mxu0 0.0
    %1464 = vmatpush1.xpose.msra.mxu0 0.0
    %1465 = vmatprep.subr.mxu0 0.0
    %1466 = vmatpush1.xpose.msra.mxu0 0.0
    %1467 = vmatprep.subr.mxu0 0.0
    %1468 = vmatpush1.xpose.msra.mxu0 0.0
    %1469 = vmatprep.subr.mxu0 0.0
    %1470 = vmatpush1.xpose.msra.mxu0 0.0
    %1471 = vmatprep.subr.mxu0 0.0
    %1472 = vmatpush1.xpose.msra.mxu0 0.0
    %1473 = vmatprep.subr.mxu0 0.0
    %1474 = vmatpush1.xpose.msra.mxu0 0.0
    %1475 = vmatprep.subr.mxu0 0.0
    %1476 = vmatpush1.xpose.msra.mxu0 0.0
    %1477 = vmatprep.subr.mxu0 0.0
    %1478 = vmatpush1.xpose.msra.mxu0 0.0
    %1479 = vmatprep.subr.mxu0 0.0
    %1480 = vmatpush1.xpose.msra.mxu0 0.0
    %1481 = vmatprep.subr.mxu0 0.0
    %1482 = vmatpush1.xpose.msra.mxu0 0.0
    %1483 = vmatprep.subr.mxu0 0.0
    %1484 = vmatpush1.xpose.msra.mxu0 0.0
    %1485 = vmatprep.subr.mxu0 0.0
    %1486 = vmatpush1.xpose.msra.mxu0 0.0
    %1487 = vmatprep.subr.mxu0 0.0
    %1488 = vmatpush1.xpose.msra.mxu0 0.0
    %1489 = vmatprep.subr.mxu0 0.0
    %1490 = vmatpush1.xpose.msra.mxu0 0.0
    %1491 = vmatprep.subr.mxu0 0.0
    %1492 = vmatpush1.xpose.msra.mxu0 0.0
    %1493 = vmatprep.subr.mxu0 0.0
    %1494 = vmatpush1.xpose.msra.mxu0 0.0
    %1495 = vmatprep.subr.mxu0 0.0
    %1496 = vmatpush1.xpose.msra.mxu0 0.0
    %1497 = vmatprep.subr.mxu0 0.0
    %1498 = vmatpush1.xpose.msra.mxu0 0.0
    %1499 = vmatprep.mubr.f32.mxu0 0.0
    %1500 = vmatmul.mubr.f32.gmra.mrb[0].mxu0 %v1431
    %v1501 = vpop.f32.mrb[0].mxu0
    %v1502 = vadd.f32 0.0, %v1501
    %v1503 = vpop.f32.mrb[0].mxu0
    %1504 = vdwg.mxu0
    %1505 = vrot.lane.b32.xlu0 %v161, 104
    %v1506 = vpop.permute.xlu0 %1505
    %1507 = vrot.lane.b32.xlu0 %v157, 72
    %v1508 = vpop.permute.xlu0 %1507
    %v1509 = vsel %vm165, %v1506, 0
    %v1511 = vsel %vm165, %v1508, 0
    %1513 = vmatprep.subr.mxu0 0.0
    %1514 = vmatpush1.xpose.msra.mxu0 %v1511
    %1515 = vmatprep.subr.mxu0 0.0
    %1516 = vmatpush1.xpose.msra.mxu0 0.0
    %1517 = vmatprep.subr.mxu0 0.0
    %1518 = vmatpush1.xpose.msra.mxu0 0.0
    %1519 = vmatprep.subr.mxu0 0.0
    %1520 = vmatpush1.xpose.msra.mxu0 0.0
    %1521 = vmatprep.subr.mxu0 0.0
    %1522 = vmatpush1.xpose.msra.mxu0 0.0
    %1523 = vmatprep.subr.mxu0 0.0
    %1524 = vmatpush1.xpose.msra.mxu0 0.0
    %1525 = vmatprep.subr.mxu0 0.0
    %1526 = vmatpush1.xpose.msra.mxu0 0.0
    %1527 = vmatprep.subr.mxu0 0.0
    %1528 = vmatpush1.xpose.msra.mxu0 0.0
    %1529 = vmatprep.subr.mxu0 0.0
    %1530 = vmatpush1.xpose.msra.mxu0 0.0
    %1531 = vmatprep.subr.mxu0 0.0
    %1532 = vmatpush1.xpose.msra.mxu0 0.0
    %1533 = vmatprep.subr.mxu0 0.0
    %1534 = vmatpush1.xpose.msra.mxu0 0.0
    %1535 = vmatprep.subr.mxu0 0.0
    %1536 = vmatpush1.xpose.msra.mxu0 0.0
    %1537 = vmatprep.subr.mxu0 0.0
    %1538 = vmatpush1.xpose.msra.mxu0 0.0
    %1539 = vmatprep.subr.mxu0 0.0
    %1540 = vmatpush1.xpose.msra.mxu0 0.0
    %1541 = vmatprep.subr.mxu0 0.0
    %1542 = vmatpush1.xpose.msra.mxu0 0.0
    %1543 = vmatprep.subr.mxu0 0.0
    %1544 = vmatpush1.xpose.msra.mxu0 0.0
    %1545 = vmatprep.subr.mxu0 0.0
    %1546 = vmatpush1.xpose.msra.mxu0 0.0
    %1547 = vmatprep.subr.mxu0 0.0
    %1548 = vmatpush1.xpose.msra.mxu0 0.0
    %1549 = vmatprep.subr.mxu0 0.0
    %1550 = vmatpush1.xpose.msra.mxu0 0.0
    %1551 = vmatprep.subr.mxu0 0.0
    %1552 = vmatpush1.xpose.msra.mxu0 0.0
    %1553 = vmatprep.subr.mxu0 0.0
    %1554 = vmatpush1.xpose.msra.mxu0 0.0
    %1555 = vmatprep.subr.mxu0 0.0
    %1556 = vmatpush1.xpose.msra.mxu0 0.0
    %1557 = vmatprep.subr.mxu0 0.0
    %1558 = vmatpush1.xpose.msra.mxu0 0.0
    %1559 = vmatprep.subr.mxu0 0.0
    %1560 = vmatpush1.xpose.msra.mxu0 0.0
    %1561 = vmatprep.subr.mxu0 0.0
    %1562 = vmatpush1.xpose.msra.mxu0 0.0
    %1563 = vmatprep.subr.mxu0 0.0
    %1564 = vmatpush1.xpose.msra.mxu0 0.0
    %1565 = vmatprep.subr.mxu0 0.0
    %1566 = vmatpush1.xpose.msra.mxu0 0.0
    %1567 = vmatprep.subr.mxu0 0.0
    %1568 = vmatpush1.xpose.msra.mxu0 0.0
    %1569 = vmatprep.subr.mxu0 0.0
    %1570 = vmatpush1.xpose.msra.mxu0 0.0
    %1571 = vmatprep.subr.mxu0 0.0
    %1572 = vmatpush1.xpose.msra.mxu0 0.0
    %1573 = vmatprep.subr.mxu0 0.0
    %1574 = vmatpush1.xpose.msra.mxu0 0.0
    %1575 = vmatprep.subr.mxu0 0.0
    %1576 = vmatpush1.xpose.msra.mxu0 0.0
    %1577 = vmatprep.mubr.f32.mxu0 0.0
    %1578 = vmatmul.mubr.f32.gmra.mrb[0].mxu0 %v1509
    %v1579 = vpop.f32.mrb[0].mxu0
    %v1580 = vadd.f32 0.0, %v1579
    %v1581 = vpop.f32.mrb[0].mxu0
    %1582 = vdwg.mxu0
    %v1583 = vsel %vm165, %v1502, -inf
    %1584 = vmax.xlane.f32.xlu0 %v1583
    %v1585 = vpop.xlane.xlu0 %1584
    %v1586 = vsel %vm165, %v1580, -inf
    %1587 = vmax.xlane.f32.xlu0 %v1586
    %v1588 = vpop.xlane.xlu0 %1587
    %v1589 = vsub.f32 %v1502, %v1585
    %v1590 = vsub.f32 %v1580, %v1588
    %v1591 = vmul.f32 %v1589, 1.442695
    %v1592 = vpow.pop %v1591
    %v1593 = vmul.f32 %v1590, 1.442695
    %v1594 = vpow.pop %v1593
    %v1595 = vsel %vm165, %v1592, 0.0
    %1596 = vadd.xlane.f32.xlu0 %v1595
    %v1597 = vpop.xlane.xlu0 %1596
    %v1598 = vsel %vm165, %v1594, 0.0
    %1599 = vadd.xlane.f32.xlu0 %v1598
    %v1600 = vpop.xlane.xlu0 %1599
    %v1601 = vrcp.pop %v1597
    %v1602 = vrcp.pop %v1600
    %v1603 = vmul.f32 %v1597, %v1601
    %v1604 = vmul.f32 %v1600, %v1602
    %v1605 = vsub.f32 2.0, %v1603
    %v1606 = vsub.f32 2.0, %v1604
    %v1607 = vmul.f32 %v1601, %v1605
    %v1608 = vmul.f32 %v1602, %v1606
    %v1609 = vmul.f32 %v1592, %v1607
    %v1610 = vmul.f32 %v1594, %v1608
    %s1611 = scalar_lea.vmem [#allocation9], 24
    %1612 = vst.msk [vmem:[%s1611] sm:$0xff] %vm165, %v1609
    %1613 = vst.msk [vmem:[%s1611 + $0x20] sm:$0xff] %vm165, %v1610
    %1614 = vrot.lane.b32.xlu0 %v152, 40
    %v1615 = vpop.permute.xlu0 %1614
    %v1618 = vsel %vm165, %v1609, 0
    %1620 = vmatprep.subr.mxu0 0.0
    %1621 = vmatpush1.msra.mxu0 %v1615
    %1622 = vmatprep.subr.mxu0 0.0
    %1623 = vmatpush1.msra.mxu0 0.0
    %1624 = vmatprep.subr.mxu0 0.0
    %1625 = vmatpush1.msra.mxu0 0.0
    %1626 = vmatprep.subr.mxu0 0.0
    %1627 = vmatpush1.msra.mxu0 0.0
    %1628 = vmatprep.subr.mxu0 0.0
    %1629 = vmatpush1.msra.mxu0 0.0
    %1630 = vmatprep.subr.mxu0 0.0
    %1631 = vmatpush1.msra.mxu0 0.0
    %1632 = vmatprep.subr.mxu0 0.0
    %1633 = vmatpush1.msra.mxu0 0.0
    %1634 = vmatprep.subr.mxu0 0.0
    %1635 = vmatpush1.msra.mxu0 0.0
    %1636 = vmatprep.subr.mxu0 0.0
    %1637 = vmatpush1.msra.mxu0 0.0
    %1638 = vmatprep.subr.mxu0 0.0
    %1639 = vmatpush1.msra.mxu0 0.0
    %1640 = vmatprep.subr.mxu0 0.0
    %1641 = vmatpush1.msra.mxu0 0.0
    %1642 = vmatprep.subr.mxu0 0.0
    %1643 = vmatpush1.msra.mxu0 0.0
    %1644 = vmatprep.subr.mxu0 0.0
    %1645 = vmatpush1.msra.mxu0 0.0
    %1646 = vmatprep.subr.mxu0 0.0
    %1647 = vmatpush1.msra.mxu0 0.0
    %1648 = vmatprep.subr.mxu0 0.0
    %1649 = vmatpush1.msra.mxu0 0.0
    %1650 = vmatprep.subr.mxu0 0.0
    %1651 = vmatpush1.msra.mxu0 0.0
    %1652 = vmatprep.subr.mxu0 0.0
    %1653 = vmatpush1.msra.mxu0 0.0
    %1654 = vmatprep.subr.mxu0 0.0
    %1655 = vmatpush1.msra.mxu0 0.0
    %1656 = vmatprep.subr.mxu0 0.0
    %1657 = vmatpush1.msra.mxu0 0.0
    %1658 = vmatprep.subr.mxu0 0.0
    %1659 = vmatpush1.msra.mxu0 0.0
    %1660 = vmatprep.subr.mxu0 0.0
    %1661 = vmatpush1.msra.mxu0 0.0
    %1662 = vmatprep.subr.mxu0 0.0
    %1663 = vmatpush1.msra.mxu0 0.0
    %1664 = vmatprep.subr.mxu0 0.0
    %1665 = vmatpush1.msra.mxu0 0.0
    %1666 = vmatprep.subr.mxu0 0.0
    %1667 = vmatpush1.msra.mxu0 0.0
    %1668 = vmatprep.subr.mxu0 0.0
    %1669 = vmatpush1.msra.mxu0 0.0
    %1670 = vmatprep.subr.mxu0 0.0
    %1671 = vmatpush1.msra.mxu0 0.0
    %1672 = vmatprep.subr.mxu0 0.0
    %1673 = vmatpush1.msra.mxu0 0.0
    %1674 = vmatprep.subr.mxu0 0.0
    %1675 = vmatpush1.msra.mxu0 0.0
    %1676 = vmatprep.subr.mxu0 0.0
    %1677 = vmatpush1.msra.mxu0 0.0
    %1678 = vmatprep.subr.mxu0 0.0
    %1679 = vmatpush1.msra.mxu0 0.0
    %1680 = vmatprep.subr.mxu0 0.0
    %1681 = vmatpush1.msra.mxu0 0.0
    %1682 = vmatprep.subr.mxu0 0.0
    %1683 = vmatpush1.msra.mxu0 0.0
    %1684 = vmatprep.mubr.f32.mxu0 0.0
    %1685 = vmatmul.mubr.f32.gmra.mrb[0].mxu0 %v1618
    %v1686 = vpop.f32.mrb[0].mxu0
    %v1687 = vadd.f32 0.0, %v1686
    %v1688 = vpop.f32.mrb[0].mxu0
    %1689 = vdwg.mxu0
    %1690 = vrot.lane.b32.xlu0 %v157, 40
    %v1691 = vpop.permute.xlu0 %1690
    %v1694 = vsel %vm165, %v1610, 0
    %1696 = vmatprep.subr.mxu0 0.0
    %1697 = vmatpush1.msra.mxu0 %v1691
    %1698 = vmatprep.subr.mxu0 0.0
    %1699 = vmatpush1.msra.mxu0 0.0
    %1700 = vmatprep.subr.mxu0 0.0
    %1701 = vmatpush1.msra.mxu0 0.0
    %1702 = vmatprep.subr.mxu0 0.0
    %1703 = vmatpush1.msra.mxu0 0.0
    %1704 = vmatprep.subr.mxu0 0.0
    %1705 = vmatpush1.msra.mxu0 0.0
    %1706 = vmatprep.subr.mxu0 0.0
    %1707 = vmatpush1.msra.mxu0 0.0
    %1708 = vmatprep.subr.mxu0 0.0
    %1709 = vmatpush1.msra.mxu0 0.0
    %1710 = vmatprep.subr.mxu0 0.0
    %1711 = vmatpush1.msra.mxu0 0.0
    %1712 = vmatprep.subr.mxu0 0.0
    %1713 = vmatpush1.msra.mxu0 0.0
    %1714 = vmatprep.subr.mxu0 0.0
    %1715 = vmatpush1.msra.mxu0 0.0
    %1716 = vmatprep.subr.mxu0 0.0
    %1717 = vmatpush1.msra.mxu0 0.0
    %1718 = vmatprep.subr.mxu0 0.0
    %1719 = vmatpush1.msra.mxu0 0.0
    %1720 = vmatprep.subr.mxu0 0.0
    %1721 = vmatpush1.msra.mxu0 0.0
    %1722 = vmatprep.subr.mxu0 0.0
    %1723 = vmatpush1.msra.mxu0 0.0
    %1724 = vmatprep.subr.mxu0 0.0
    %1725 = vmatpush1.msra.mxu0 0.0
    %1726 = vmatprep.subr.mxu0 0.0
    %1727 = vmatpush1.msra.mxu0 0.0
    %1728 = vmatprep.subr.mxu0 0.0
    %1729 = vmatpush1.msra.mxu0 0.0
    %1730 = vmatprep.subr.mxu0 0.0
    %1731 = vmatpush1.msra.mxu0 0.0
    %1732 = vmatprep.subr.mxu0 0.0
    %1733 = vmatpush1.msra.mxu0 0.0
    %1734 = vmatprep.subr.mxu0 0.0
    %1735 = vmatpush1.msra.mxu0 0.0
    %1736 = vmatprep.subr.mxu0 0.0
    %1737 = vmatpush1.msra.mxu0 0.0
    %1738 = vmatprep.subr.mxu0 0.0
    %1739 = vmatpush1.msra.mxu0 0.0
    %1740 = vmatprep.subr.mxu0 0.0
    %1741 = vmatpush1.msra.mxu0 0.0
    %1742 = vmatprep.subr.mxu0 0.0
    %1743 = vmatpush1.msra.mxu0 0.0
    %1744 = vmatprep.subr.mxu0 0.0
    %1745 = vmatpush1.msra.mxu0 0.0
    %1746 = vmatprep.subr.mxu0 0.0
    %1747 = vmatpush1.msra.mxu0 0.0
    %1748 = vmatprep.subr.mxu0 0.0
    %1749 = vmatpush1.msra.mxu0 0.0
    %1750 = vmatprep.subr.mxu0 0.0
    %1751 = vmatpush1.msra.mxu0 0.0
    %1752 = vmatprep.subr.mxu0 0.0
    %1753 = vmatpush1.msra.mxu0 0.0
    %1754 = vmatprep.subr.mxu0 0.0
    %1755 = vmatpush1.msra.mxu0 0.0
    %1756 = vmatprep.subr.mxu0 0.0
    %1757 = vmatpush1.msra.mxu0 0.0
    %1758 = vmatprep.subr.mxu0 0.0
    %1759 = vmatpush1.msra.mxu0 0.0
    %1760 = vmatprep.mubr.f32.mxu0 0.0
    %1761 = vmatmul.mubr.f32.gmra.mrb[0].mxu0 %v1694
    %v1762 = vpop.f32.mrb[0].mxu0
    %v1763 = vadd.f32 0.0, %v1762
    %v1764 = vpop.f32.mrb[0].mxu0
    %1765 = vdwg.mxu0
    %v1766 = vld [vmem:[#allocation7 + $0x18] sm:$0xff]
    %v1768 = vsel %vm165, %v1687, 0
    %v1771 = vsel %vm165, %v1763, 0
    %1773 = vmatprep.subr.mxu0 0.0
    %1774 = vmatpush1.msra.mxu0 %v1766
    %1775 = vmatprep.subr.mxu0 0.0
    %1776 = vmatpush1.msra.mxu0 0.0
    %1777 = vmatprep.subr.mxu0 0.0
    %1778 = vmatpush1.msra.mxu0 0.0
    %1779 = vmatprep.subr.mxu0 0.0
    %1780 = vmatpush1.msra.mxu0 0.0
    %1781 = vmatprep.subr.mxu0 0.0
    %1782 = vmatpush1.msra.mxu0 0.0
    %1783 = vmatprep.subr.mxu0 0.0
    %1784 = vmatpush1.msra.mxu0 0.0
    %1785 = vmatprep.subr.mxu0 0.0
    %1786 = vmatpush1.msra.mxu0 0.0
    %1787 = vmatprep.subr.mxu0 0.0
    %1788 = vmatpush1.msra.mxu0 0.0
    %1789 = vmatprep.subr.mxu0 0.0
    %1790 = vmatpush1.msra.mxu0 0.0
    %1791 = vmatprep.subr.mxu0 0.0
    %1792 = vmatpush1.msra.mxu0 0.0
    %1793 = vmatprep.subr.mxu0 0.0
    %1794 = vmatpush1.msra.mxu0 0.0
    %1795 = vmatprep.subr.mxu0 0.0
    %1796 = vmatpush1.msra.mxu0 0.0
    %1797 = vmatprep.subr.mxu0 0.0
    %1798 = vmatpush1.msra.mxu0 0.0
    %1799 = vmatprep.subr.mxu0 0.0
    %1800 = vmatpush1.msra.mxu0 0.0
    %1801 = vmatprep.subr.mxu0 0.0
    %1802 = vmatpush1.msra.mxu0 0.0
    %1803 = vmatprep.subr.mxu0 0.0
    %1804 = vmatpush1.msra.mxu0 0.0
    %1805 = vmatprep.subr.mxu0 0.0
    %1806 = vmatpush1.msra.mxu0 0.0
    %1807 = vmatprep.subr.mxu0 0.0
    %1808 = vmatpush1.msra.mxu0 0.0
    %1809 = vmatprep.subr.mxu0 0.0
    %1810 = vmatpush1.msra.mxu0 0.0
    %1811 = vmatprep.subr.mxu0 0.0
    %1812 = vmatpush1.msra.mxu0 0.0
    %1813 = vmatprep.subr.mxu0 0.0
    %1814 = vmatpush1.msra.mxu0 0.0
    %1815 = vmatprep.subr.mxu0 0.0
    %1816 = vmatpush1.msra.mxu0 0.0
    %1817 = vmatprep.subr.mxu0 0.0
    %1818 = vmatpush1.msra.mxu0 0.0
    %1819 = vmatprep.subr.mxu0 0.0
    %1820 = vmatpush1.msra.mxu0 0.0
    %1821 = vmatprep.subr.mxu0 0.0
    %1822 = vmatpush1.msra.mxu0 0.0
    %1823 = vmatprep.subr.mxu0 0.0
    %1824 = vmatpush1.msra.mxu0 0.0
    %1825 = vmatprep.subr.mxu0 0.0
    %1826 = vmatpush1.msra.mxu0 0.0
    %1827 = vmatprep.subr.mxu0 0.0
    %1828 = vmatpush1.msra.mxu0 0.0
    %1829 = vmatprep.subr.mxu0 0.0
    %1830 = vmatpush1.msra.mxu0 0.0
    %1831 = vmatprep.subr.mxu0 0.0
    %1832 = vmatpush1.msra.mxu0 0.0
    %1833 = vmatprep.subr.mxu0 0.0
    %1834 = vmatpush1.msra.mxu0 0.0
    %1835 = vmatprep.subr.mxu0 0.0
    %1836 = vmatpush1.msra.mxu0 0.0
    %1837 = vmatprep.mubr.f32.mxu0 0.0
    %1838 = vmatmul.mubr.f32.gmra.mrb[0].mxu0 %v1768
    %v1839 = vpop.f32.mrb[0].mxu0
    %v1840 = vadd.f32 0.0, %v1839
    %v1841 = vpop.f32.mrb[0].mxu0
    %1842 = vmatprep.mubr.f32.mxu0 0.0
    %1843 = vmatmul.mubr.f32.gmra.mrb[0].mxu0 %v1771
    %v1844 = vpop.f32.mrb[0].mxu0
    %v1845 = vadd.f32 0.0, %v1844
    %v1846 = vpop.f32.mrb[0].mxu0
    %1847 = vdwg.mxu0
    %v1848 = vadd.f32 %v1425, %v1840
    %v1849 = vadd.f32 %v1426, %v1845
    %v1850 = vld [vmem:[%s4] sm:$0x1]
    %v1852 = vlaneseq
    %v1853 = vshrl.u32 %v1852, 7
    %v1854 = vsub.s32 0, %v1853
    %v1855 = vrot.slane %v1850, %v1854
    %v1857 = vadd.f32 %v1848, %v1855
    %v1858 = vadd.f32 %v1849, %v1855
    %1859 = vst.msk [vmem:[#allocation8] sm:$0xff] %vm78, %v1857
    %1860 = vst.msk [vmem:[#allocation8 + $0x8] sm:$0xff] %vm78, %v1858
    // Predicated region
    $region34: #{attention_forward.1} parent=1 // pred_check
      _
    $region35: #{attention_forward.1} parent=1 // pred_check_branch
      %1862 = sbr.rel (0) target = $region37
    $region36: #{attention_forward.1} parent=1 // pred_region
      %s1864 = ssub.s32 256, 256
      %1865 = vsyncadd [#allocation4], %s1864
      %s1866 = sshll.u32 [#allocation8], 4
      %s1867 = int_to_ptr.vmem [resolvable:$true] %s1866
      %1872 = dma.vmem_to_hbm [thread:$0]  %s1867, 256, %s5, [#allocation4], 128, 128, 8
    $region37: #{attention_forward.1} parent=1 // pred_fallthru
      _
    // Predicated region
    $region38: #{attention_forward.1} parent=1 // pred_check
      _
    $region39: #{attention_forward.1} parent=1 // pred_check_branch
      %1874 = sbr.rel (0) target = $region41
    $region40: #{attention_forward.1} parent=1 // pred_region
      %s1876 = ssub.s32 1024, 1024
      %1877 = vsyncadd [#allocation10], %s1876
      %s1878 = sshll.u32 [#allocation9], 4
      %s1879 = int_to_ptr.vmem [resolvable:$true] %s1878
      %1884 = dma.vmem_to_hbm [thread:$0]  %s1879, 1024, %s6, [#allocation10], 128, 128, 8
    $region41: #{attention_forward.1} parent=1 // pred_fallthru
      _
    // Predicated region
    $region42: #{attention_forward.1} parent=1 // pred_check
      _
    $region43: #{attention_forward.1} parent=1 // pred_check_branch
      %1886 = sbr.rel (0) target = $region45
    $region44: #{attention_forward.1} parent=1 // pred_region
      %1887 = dma.done [#allocation4], 256
    $region45: #{attention_forward.1} parent=1 // pred_fallthru
      _
    // Predicated region
    $region46: #{attention_forward.1} parent=1 // pred_check
      _
    $region47: #{attention_forward.1} parent=1 // pred_check_branch
      %1889 = sbr.rel (0) target = $region49
    $region48: #{attention_forward.1} parent=1 // pred_region
      %1890 = dma.done [#allocation10], 1024
    $region49: #{attention_forward.1} parent=1 // pred_fallthru
      _
    %1891 = vsyncpa [#allocation3], 1
    %1892 = vsyncpa [#allocation6], 1
    %1893 = vsyncpa [#allocation4], 1
    %1894 = vsyncpa [#allocation10], 1

</llo_original>
